<compile_context>
chip_gen: v7x
topology: tpu7x:2x2x1
jax: 0.10.0
libtpu: 0.0.40
codegen_flags: <defaults>
</compile_context>

<pallas_src>
import functools
import math

import jax
import jax.numpy as jnp
from jax import lax
from jax.experimental import pallas as pl
from jax.experimental.pallas import tpu as pltpu


def _mha_kernel(*refs, num_heads, head_dim, use_mask):
    if use_mask:
        (q_ref, k_ref, v_ref, kpm_ref,
         wq_ref, wk_ref, wv_ref, bq_ref, bk_ref, bv_ref, wo_ref, bo_ref,
         out_ref, attnw_ref) = refs
    else:
        (q_ref, k_ref, v_ref,
         wq_ref, wk_ref, wv_ref, bq_ref, bk_ref, bv_ref, wo_ref, bo_ref,
         out_ref, attnw_ref) = refs
        kpm_ref = None

    H = num_heads
    Dh = head_dim
    scale = 1.0 / math.sqrt(Dh)

    q_in = q_ref[0]            # (TL, E) bf16
    k_in = k_ref[0]            # (S,  E) bf16
    v_in = v_ref[0]            # (S,  E) bf16
    TL, E = q_in.shape
    S = k_in.shape[0]

    if use_mask:
        # Additive bias, computed ONCE (hoisted out of the head loop).
        neg_bias = jnp.broadcast_to(kpm_ref[...] * jnp.float32(-1e30), (TL, S))

    out_acc = jnp.zeros((TL, E), jnp.float32)     # out-projection accumulator
    probs_acc = jnp.zeros((TL, S), jnp.float32)   # head-averaged attention weights

    for h in range(H):
        # Per-head projections: (TL,E)@(E,Dh) on pre-split, pre-transposed weights.
        qh = jnp.dot(q_in, wq_ref[h], preferred_element_type=jnp.float32) + bq_ref[h]
        kh = jnp.dot(k_in, wk_ref[h], preferred_element_type=jnp.float32) + bk_ref[h]
        vh = jnp.dot(v_in, wv_ref[h], preferred_element_type=jnp.float32) + bv_ref[h]

        qh = (qh * scale).astype(jnp.bfloat16)
        # Contract head dims directly: (TL,Dh) x (S,Dh) -> (TL,S), no transpose.
        scores = lax.dot_general(qh, kh.astype(jnp.bfloat16),
                                 (((1,), (1,)), ((), ())),
                                 preferred_element_type=jnp.float32)
        if use_mask:
            scores = scores + neg_bias

        # Softmax in f32 (EUP reciprocal).
        m = jnp.max(scores, axis=-1, keepdims=True)
        p = jnp.exp(scores - m)
        denom = jnp.sum(p, axis=-1, keepdims=True)
        probs = p * pl.reciprocal(denom, approx=True)            # (TL, S) f32

        probs_acc = probs_acc + probs
        ctx = jnp.dot(probs.astype(jnp.bfloat16), vh.astype(jnp.bfloat16),
                      preferred_element_type=jnp.float32)        # (TL, Dh)
        # Output projection folded into the head loop (no concat, pure MXU).
        out_acc = out_acc + jnp.dot(ctx.astype(jnp.bfloat16), wo_ref[h],
                                    preferred_element_type=jnp.float32)

    out_ref[0] = (out_acc + bo_ref[...]).astype(out_ref.dtype)
    attnw_ref[0] = (probs_acc * jnp.float32(1.0 / H)).astype(attnw_ref.dtype)


def cross_mha_pallas(query, key, value, params, num_heads,
                     key_padding_mask=None, query_tile=256):
    """query (B,L,E), key/value (B,S,E). Returns (attn_output (B,L,E), attn_weights (B,L,S))."""
    B, L, E = query.shape
    S = key.shape[1]
    H = num_heads
    assert E % H == 0, "embed_dim must be divisible by num_heads"
    Dh = E // H

    w_in = params["in_proj_weight"]     # (3E, E)   PyTorch layout: x @ W.T + b
    b_in = params["in_proj_bias"]       # (3E,)
    w_out = params["out_proj_weight"]   # (E, E)
    b_out = params["out_proj_bias"]     # (E,)

    cdt = jnp.bfloat16  # matmul-operand dtype (accumulation stays f32 in-kernel)

    def split_heads_w(w):
        # effective projection is x @ w.T ; split output features per head -> (H, E, Dh)
        return jnp.transpose(w.T.reshape(E, H, Dh), (1, 0, 2)).astype(cdt)

    w_q_h = split_heads_w(w_in[0:E])
    w_k_h = split_heads_w(w_in[E:2 * E])
    w_v_h = split_heads_w(w_in[2 * E:3 * E])
    b_q_h = b_in[0:E].reshape(H, 1, Dh).astype(jnp.float32)
    b_k_h = b_in[E:2 * E].reshape(H, 1, Dh).astype(jnp.float32)
    b_v_h = b_in[2 * E:3 * E].reshape(H, 1, Dh).astype(jnp.float32)
    # out = concat_heads @ w_out.T ; rows h*Dh:(h+1)*Dh of w_out.T belong to head h.
    w_out_h = w_out.T.reshape(H, Dh, E).astype(cdt)
    b_out2 = b_out.reshape(1, E).astype(jnp.float32)

    use_mask = key_padding_mask is not None

    TL = min(L, query_tile)
    grid = (B, pl.cdiv(L, TL))

    in_specs = [
        pl.BlockSpec((1, TL, E), lambda b, lq: (b, lq, 0)),   # query tile
        pl.BlockSpec((1, S, E), lambda b, lq: (b, 0, 0)),     # key
        pl.BlockSpec((1, S, E), lambda b, lq: (b, 0, 0)),     # value
    ]
    args = [query.astype(cdt), key.astype(cdt), value.astype(cdt)]
    if use_mask:
        in_specs.append(pl.BlockSpec((1, S), lambda b, lq: (b, 0)))
        args.append(key_padding_mask.astype(jnp.float32))

    in_specs += [
        pl.BlockSpec((H, E, Dh), lambda b, lq: (0, 0, 0)),    # w_q_h
        pl.BlockSpec((H, E, Dh), lambda b, lq: (0, 0, 0)),    # w_k_h
        pl.BlockSpec((H, E, Dh), lambda b, lq: (0, 0, 0)),    # w_v_h
        pl.BlockSpec((H, 1, Dh), lambda b, lq: (0, 0, 0)),    # b_q_h
        pl.BlockSpec((H, 1, Dh), lambda b, lq: (0, 0, 0)),    # b_k_h
        pl.BlockSpec((H, 1, Dh), lambda b, lq: (0, 0, 0)),    # b_v_h
        pl.BlockSpec((H, Dh, E), lambda b, lq: (0, 0, 0)),    # w_out_h
        pl.BlockSpec((1, E), lambda b, lq: (0, 0)),           # b_out
    ]
    args += [w_q_h, w_k_h, w_v_h, b_q_h, b_k_h, b_v_h, w_out_h, b_out2]

    out_specs = [
        pl.BlockSpec((1, TL, E), lambda b, lq: (b, lq, 0)),   # attn_output
        pl.BlockSpec((1, TL, S), lambda b, lq: (b, lq, 0)),   # attn_weights (head-avg)
    ]
    out_shapes = (
        jax.ShapeDtypeStruct((B, L, E), jnp.float32),
        jax.ShapeDtypeStruct((B, L, S), jnp.float32),
    )

    kernel = functools.partial(_mha_kernel, num_heads=H, head_dim=Dh, use_mask=use_mask)

    grid_spec = pltpu.PrefetchScalarGridSpec(
        num_scalar_prefetch=0,
        grid=grid,
        in_specs=in_specs,
        out_specs=out_specs,
    )

    return pl.pallas_call(
        kernel,
        out_shape=out_shapes,
        grid_spec=grid_spec,
        compiler_params=pltpu.CompilerParams(
            dimension_semantics=("parallel", "parallel"),
            vmem_limit_bytes=64 * 1024 * 1024,
        ),
    )(*args)


def _reference_mha(query, key, value, params, num_heads, key_padding_mask=None):
    """Pure-JAX (f32) reference matching torch.nn.MultiheadAttention defaults."""
    B, L, E = query.shape
    S = key.shape[1]
    H = num_heads
    Dh = E // H
    w_in, b_in = params["in_proj_weight"], params["in_proj_bias"]
    w_out, b_out = params["out_proj_weight"], params["out_proj_bias"]

    q = query @ w_in[0:E].T + b_in[0:E]
    k = key @ w_in[E:2 * E].T + b_in[E:2 * E]
    v = value @ w_in[2 * E:3 * E].T + b_in[2 * E:3 * E]

    q = q.reshape(B, L, H, Dh).transpose(0, 2, 1, 3)
    k = k.reshape(B, S, H, Dh).transpose(0, 2, 1, 3)
    v = v.reshape(B, S, H, Dh).transpose(0, 2, 1, 3)

    scores = jnp.einsum("bhld,bhsd->bhls", q, k) / math.sqrt(Dh)
    if key_padding_mask is not None:
        scores = jnp.where(key_padding_mask[:, None, None, :], -1e30, scores)
    probs = jax.nn.softmax(scores, axis=-1)
    ctx = jnp.einsum("bhls,bhsd->bhld", probs, v)
    ctx = ctx.transpose(0, 2, 1, 3).reshape(B, L, E)
    out = ctx @ w_out.T + b_out
    return out, probs.mean(axis=1)


def init_params(key, embed_dim):
    """Deterministic xavier-uniform-style init matching nn.MultiheadAttention shapes."""
    k1, k2, k3, k4 = jax.random.split(key, 4)
    bound_in = math.sqrt(6.0 / (3 * embed_dim + embed_dim))
    bound_out = math.sqrt(6.0 / (embed_dim + embed_dim))
    return {
        "in_proj_weight": jax.random.uniform(k1, (3 * embed_dim, embed_dim),
                                             jnp.float32, -bound_in, bound_in),
        "in_proj_bias": 0.1 * jax.random.normal(k3, (3 * embed_dim,), jnp.float32),
        "out_proj_weight": jax.random.uniform(k2, (embed_dim, embed_dim),
                                              jnp.float32, -bound_out, bound_out),
        "out_proj_bias": 0.1 * jax.random.normal(k4, (embed_dim,), jnp.float32),
    }


if __name__ == "__main__":
    B, L, S, E, H = 2, 8, 8, 32, 4

    root = jax.random.PRNGKey(0)
    kq, kk, kv, kp, km = jax.random.split(root, 5)

    query = jax.random.normal(kq, (B, L, E), dtype=jnp.float32)
    key = jax.random.normal(kk, (B, S, E), dtype=jnp.float32)
    value = jax.random.normal(kv, (B, S, E), dtype=jnp.float32)
    params = init_params(kp, E)

    # bf16 matmul operands with f32 accumulation -> loosened tolerance vs. f32 ref.
    ATOL = RTOL = 5e-2

    # --- no mask ---
    attn_out, attn_w = cross_mha_pallas(query, key, value, params, H)
    jax.block_until_ready((attn_out, attn_w))
    ref_out, ref_w = _reference_mha(query, key, value, params, H)
    assert jnp.allclose(attn_out, ref_out, atol=ATOL, rtol=RTOL), "attn_output mismatch"
    assert jnp.allclose(attn_w, ref_w, atol=ATOL, rtol=RTOL), "attn_weights mismatch"

    # --- key_padding_mask path (True = ignore); keep >=1 valid key per row ---
    kpm = jax.random.bernoulli(km, 0.3, (B, S)).at[:, 0].set(False)
    attn_out_m, attn_w_m = cross_mha_pallas(query, key, value, params, H,
                                            key_padding_mask=kpm)
    jax.block_until_ready((attn_out_m, attn_w_m))
    ref_out_m, ref_w_m = _reference_mha(query, key, value, params, H,
                                        key_padding_mask=kpm)
    assert jnp.allclose(attn_out_m, ref_out_m, atol=ATOL, rtol=RTOL), "masked attn_output mismatch"
    assert jnp.allclose(attn_w_m, ref_w_m, atol=ATOL, rtol=RTOL), "masked attn_weights mismatch"

    print("KERNEL_OK")
</pallas_src>

<mosaic_0001>
module attributes {stable_mosaic.version = 11 : i64} {
  func.func @_mha_kernel(%arg0: i32, %arg1: i32, %arg2: memref<1x8x32xbf16, #tpu.memory_space<vmem>>, %arg3: memref<1x8x32xbf16, #tpu.memory_space<vmem>>, %arg4: memref<1x8x32xbf16, #tpu.memory_space<vmem>>, %arg5: memref<4x32x8xbf16, #tpu.memory_space<vmem>>, %arg6: memref<4x32x8xbf16, #tpu.memory_space<vmem>>, %arg7: memref<4x32x8xbf16, #tpu.memory_space<vmem>>, %arg8: memref<4x1x8xf32, #tpu.memory_space<vmem>>, %arg9: memref<4x1x8xf32, #tpu.memory_space<vmem>>, %arg10: memref<4x1x8xf32, #tpu.memory_space<vmem>>, %arg11: memref<4x8x32xbf16, #tpu.memory_space<vmem>>, %arg12: memref<1x32xf32, #tpu.memory_space<vmem>>, %arg13: memref<1x8x32xf32, #tpu.memory_space<vmem>>, %arg14: memref<1x8x8xf32, #tpu.memory_space<vmem>>) attributes {dimension_semantics = [#tpu.dimension_semantics<parallel>, #tpu.dimension_semantics<parallel>], iteration_bounds = array<i64: 2, 1>, scalar_prefetch = 0 : i64, scratch_operands = 0 : i64, tpu.core_type = #tpu.core_type<tc>, window_params = [{transform_indices = @transform_0, window_bounds = array<i64: 1, 8, 32>}, {transform_indices = @transform_1, window_bounds = array<i64: 1, 8, 32>}, {transform_indices = @transform_2, window_bounds = array<i64: 1, 8, 32>}, {pipeline_mode = #tpu.pipeline_mode<synchronous>, transform_indices = @transform_3, window_bounds = array<i64: 4, 32, 8>}, {pipeline_mode = #tpu.pipeline_mode<synchronous>, transform_indices = @transform_4, window_bounds = array<i64: 4, 32, 8>}, {pipeline_mode = #tpu.pipeline_mode<synchronous>, transform_indices = @transform_5, window_bounds = array<i64: 4, 32, 8>}, {pipeline_mode = #tpu.pipeline_mode<synchronous>, transform_indices = @transform_6, window_bounds = array<i64: 4, 1, 8>}, {pipeline_mode = #tpu.pipeline_mode<synchronous>, transform_indices = @transform_7, window_bounds = array<i64: 4, 1, 8>}, {pipeline_mode = #tpu.pipeline_mode<synchronous>, transform_indices = @transform_8, window_bounds = array<i64: 4, 1, 8>}, {pipeline_mode = #tpu.pipeline_mode<synchronous>, transform_indices = @transform_9, window_bounds = array<i64: 4, 8, 32>}, {pipeline_mode = #tpu.pipeline_mode<synchronous>, transform_indices = @transform_10, window_bounds = array<i64: 1, 32>}, {transform_indices = @transform_11, window_bounds = array<i64: 1, 8, 32>}, {transform_indices = @transform_12, window_bounds = array<i64: 1, 8, 8>}]} {
    %c0 = arith.constant 0 : index
    %c0_0 = arith.constant 0 : index
    %c0_1 = arith.constant 0 : index
    %0 = vector.load %arg2[%c0, %c0_0, %c0_1] : memref<1x8x32xbf16, #tpu.memory_space<vmem>>, vector<1x8x32xbf16>
    %1 = vector.shape_cast %0 : vector<1x8x32xbf16> to vector<8x32xbf16>
    %c0_2 = arith.constant 0 : index
    %c0_3 = arith.constant 0 : index
    %c0_4 = arith.constant 0 : index
    %2 = vector.load %arg3[%c0_2, %c0_3, %c0_4] : memref<1x8x32xbf16, #tpu.memory_space<vmem>>, vector<1x8x32xbf16>
    %3 = vector.shape_cast %2 : vector<1x8x32xbf16> to vector<8x32xbf16>
    %c0_5 = arith.constant 0 : index
    %c0_6 = arith.constant 0 : index
    %c0_7 = arith.constant 0 : index
    %4 = vector.load %arg4[%c0_5, %c0_6, %c0_7] : memref<1x8x32xbf16, #tpu.memory_space<vmem>>, vector<1x8x32xbf16>
    %5 = vector.shape_cast %4 : vector<1x8x32xbf16> to vector<8x32xbf16>
    %cst = arith.constant 0.000000e+00 : f32
    %6 = vector.broadcast %cst : f32 to vector<8x32xf32>
    %cst_8 = arith.constant 0.000000e+00 : f32
    %7 = vector.broadcast %cst_8 : f32 to vector<8x8xf32>
    %c0_9 = arith.constant 0 : index
    %c0_10 = arith.constant 0 : index
    %c0_11 = arith.constant 0 : index
    %8 = vector.load %arg5[%c0_9, %c0_10, %c0_11] : memref<4x32x8xbf16, #tpu.memory_space<vmem>>, vector<1x32x8xbf16>
    %9 = vector.shape_cast %8 : vector<1x32x8xbf16> to vector<32x8xbf16>
    %cst_12 = arith.constant dense<0.000000e+00> : vector<8x8xf32>
    %10 = tpu.matmul %1, %9, %cst_12 {dimension_numbers = #tpu.dot_dimension_numbers<[1], [0], [0], [1], [0, 0, 1, 1], [], []>} : vector<8x32xbf16>, vector<32x8xbf16>, vector<8x8xf32> -> vector<8x8xf32>
    %c0_13 = arith.constant 0 : index
    %c0_14 = arith.constant 0 : index
    %c0_15 = arith.constant 0 : index
    %11 = vector.load %arg8[%c0_13, %c0_14, %c0_15] : memref<4x1x8xf32, #tpu.memory_space<vmem>>, vector<1x1x8xf32>
    %12 = vector.shape_cast %11 : vector<1x1x8xf32> to vector<1x8xf32>
    %13 = vector.broadcast %12 : vector<1x8xf32> to vector<8x8xf32>
    %14 = arith.addf %10, %13 : vector<8x8xf32>
    %c0_16 = arith.constant 0 : index
    %c0_17 = arith.constant 0 : index
    %c0_18 = arith.constant 0 : index
    %15 = vector.load %arg6[%c0_16, %c0_17, %c0_18] : memref<4x32x8xbf16, #tpu.memory_space<vmem>>, vector<1x32x8xbf16>
    %16 = vector.shape_cast %15 : vector<1x32x8xbf16> to vector<32x8xbf16>
    %cst_19 = arith.constant dense<0.000000e+00> : vector<8x8xf32>
    %17 = tpu.matmul %3, %16, %cst_19 {dimension_numbers = #tpu.dot_dimension_numbers<[1], [0], [0], [1], [0, 0, 1, 1], [], []>} : vector<8x32xbf16>, vector<32x8xbf16>, vector<8x8xf32> -> vector<8x8xf32>
    %c0_20 = arith.constant 0 : index
    %c0_21 = arith.constant 0 : index
    %c0_22 = arith.constant 0 : index
    %18 = vector.load %arg9[%c0_20, %c0_21, %c0_22] : memref<4x1x8xf32, #tpu.memory_space<vmem>>, vector<1x1x8xf32>
    %19 = vector.shape_cast %18 : vector<1x1x8xf32> to vector<1x8xf32>
    %20 = vector.broadcast %19 : vector<1x8xf32> to vector<8x8xf32>
    %21 = arith.addf %17, %20 : vector<8x8xf32>
    %c0_23 = arith.constant 0 : index
    %c0_24 = arith.constant 0 : index
    %c0_25 = arith.constant 0 : index
    %22 = vector.load %arg7[%c0_23, %c0_24, %c0_25] : memref<4x32x8xbf16, #tpu.memory_space<vmem>>, vector<1x32x8xbf16>
    %23 = vector.shape_cast %22 : vector<1x32x8xbf16> to vector<32x8xbf16>
    %cst_26 = arith.constant dense<0.000000e+00> : vector<8x8xf32>
    %24 = tpu.matmul %5, %23, %cst_26 {dimension_numbers = #tpu.dot_dimension_numbers<[1], [0], [0], [1], [0, 0, 1, 1], [], []>} : vector<8x32xbf16>, vector<32x8xbf16>, vector<8x8xf32> -> vector<8x8xf32>
    %c0_27 = arith.constant 0 : index
    %c0_28 = arith.constant 0 : index
    %c0_29 = arith.constant 0 : index
    %25 = vector.load %arg10[%c0_27, %c0_28, %c0_29] : memref<4x1x8xf32, #tpu.memory_space<vmem>>, vector<1x1x8xf32>
    %26 = vector.shape_cast %25 : vector<1x1x8xf32> to vector<1x8xf32>
    %27 = vector.broadcast %26 : vector<1x8xf32> to vector<8x8xf32>
    %28 = arith.addf %24, %27 : vector<8x8xf32>
    %cst_30 = arith.constant 0.353553385 : f32
    %29 = vector.broadcast %cst_30 : f32 to vector<8x8xf32>
    %30 = arith.mulf %14, %29 : vector<8x8xf32>
    %31 = arith.truncf %30 : vector<8x8xf32> to vector<8x8xbf16>
    %32 = arith.truncf %21 : vector<8x8xf32> to vector<8x8xbf16>
    %cst_31 = arith.constant dense<0.000000e+00> : vector<8x8xf32>
    %33 = tpu.matmul %31, %32, %cst_31 {dimension_numbers = #tpu.dot_dimension_numbers<[1], [1], [0], [0], [0, 0, 1, 0], [], []>} : vector<8x8xbf16>, vector<8x8xbf16>, vector<8x8xf32> -> vector<8x8xf32>
    %cst_32 = arith.constant dense<0xFF800000> : vector<8xf32>
    %34 = vector.multi_reduction <maximumf>, %33, %cst_32 [1] : vector<8x8xf32> to vector<8xf32>
    %35 = vector.shape_cast %34 : vector<8xf32> to vector<8x1xf32>
    %36 = vector.broadcast %35 : vector<8x1xf32> to vector<8x8xf32>
    %37 = arith.subf %33, %36 : vector<8x8xf32>
    %38 = math.exp %37 : vector<8x8xf32>
    %cst_33 = arith.constant dense<0.000000e+00> : vector<8xf32>
    %39 = vector.multi_reduction <add>, %38, %cst_33 [1] : vector<8x8xf32> to vector<8xf32>
    %40 = vector.shape_cast %39 : vector<8xf32> to vector<8x1xf32>
    %41 = tpu.reciprocal %40 {approx = true} : vector<8x1xf32> -> vector<8x1xf32>
    %42 = vector.broadcast %41 : vector<8x1xf32> to vector<8x8xf32>
    %43 = arith.mulf %38, %42 : vector<8x8xf32>
    %44 = arith.addf %7, %43 : vector<8x8xf32>
    %45 = arith.truncf %43 : vector<8x8xf32> to vector<8x8xbf16>
    %46 = arith.truncf %28 : vector<8x8xf32> to vector<8x8xbf16>
    %cst_34 = arith.constant dense<0.000000e+00> : vector<8x8xf32>
    %47 = tpu.matmul %45, %46, %cst_34 {dimension_numbers = #tpu.dot_dimension_numbers<[1], [0], [0], [1], [0, 0, 1, 1], [], []>} : vector<8x8xbf16>, vector<8x8xbf16>, vector<8x8xf32> -> vector<8x8xf32>
    %48 = arith.truncf %47 : vector<8x8xf32> to vector<8x8xbf16>
    %c0_35 = arith.constant 0 : index
    %c0_36 = arith.constant 0 : index
    %c0_37 = arith.constant 0 : index
    %49 = vector.load %arg11[%c0_35, %c0_36, %c0_37] : memref<4x8x32xbf16, #tpu.memory_space<vmem>>, vector<1x8x32xbf16>
    %50 = vector.shape_cast %49 : vector<1x8x32xbf16> to vector<8x32xbf16>
    %cst_38 = arith.constant dense<0.000000e+00> : vector<8x32xf32>
    %51 = tpu.matmul %48, %50, %cst_38 {dimension_numbers = #tpu.dot_dimension_numbers<[1], [0], [0], [1], [0, 0, 1, 1], [], []>} : vector<8x8xbf16>, vector<8x32xbf16>, vector<8x32xf32> -> vector<8x32xf32>
    %52 = arith.addf %6, %51 : vector<8x32xf32>
    %c1 = arith.constant 1 : index
    %c0_39 = arith.constant 0 : index
    %c0_40 = arith.constant 0 : index
    %53 = vector.load %arg5[%c1, %c0_39, %c0_40] : memref<4x32x8xbf16, #tpu.memory_space<vmem>>, vector<1x32x8xbf16>
    %54 = vector.shape_cast %53 : vector<1x32x8xbf16> to vector<32x8xbf16>
    %cst_41 = arith.constant dense<0.000000e+00> : vector<8x8xf32>
    %55 = tpu.matmul %1, %54, %cst_41 {dimension_numbers = #tpu.dot_dimension_numbers<[1], [0], [0], [1], [0, 0, 1, 1], [], []>} : vector<8x32xbf16>, vector<32x8xbf16>, vector<8x8xf32> -> vector<8x8xf32>
    %c1_42 = arith.constant 1 : index
    %c0_43 = arith.constant 0 : index
    %c0_44 = arith.constant 0 : index
    %56 = vector.load %arg8[%c1_42, %c0_43, %c0_44] : memref<4x1x8xf32, #tpu.memory_space<vmem>>, vector<1x1x8xf32>
    %57 = vector.shape_cast %56 : vector<1x1x8xf32> to vector<1x8xf32>
    %58 = vector.broadcast %57 : vector<1x8xf32> to vector<8x8xf32>
    %59 = arith.addf %55, %58 : vector<8x8xf32>
    %c1_45 = arith.constant 1 : index
    %c0_46 = arith.constant 0 : index
    %c0_47 = arith.constant 0 : index
    %60 = vector.load %arg6[%c1_45, %c0_46, %c0_47] : memref<4x32x8xbf16, #tpu.memory_space<vmem>>, vector<1x32x8xbf16>
    %61 = vector.shape_cast %60 : vector<1x32x8xbf16> to vector<32x8xbf16>
    %cst_48 = arith.constant dense<0.000000e+00> : vector<8x8xf32>
    %62 = tpu.matmul %3, %61, %cst_48 {dimension_numbers = #tpu.dot_dimension_numbers<[1], [0], [0], [1], [0, 0, 1, 1], [], []>} : vector<8x32xbf16>, vector<32x8xbf16>, vector<8x8xf32> -> vector<8x8xf32>
    %c1_49 = arith.constant 1 : index
    %c0_50 = arith.constant 0 : index
    %c0_51 = arith.constant 0 : index
    %63 = vector.load %arg9[%c1_49, %c0_50, %c0_51] : memref<4x1x8xf32, #tpu.memory_space<vmem>>, vector<1x1x8xf32>
    %64 = vector.shape_cast %63 : vector<1x1x8xf32> to vector<1x8xf32>
    %65 = vector.broadcast %64 : vector<1x8xf32> to vector<8x8xf32>
    %66 = arith.addf %62, %65 : vector<8x8xf32>
    %c1_52 = arith.constant 1 : index
    %c0_53 = arith.constant 0 : index
    %c0_54 = arith.constant 0 : index
    %67 = vector.load %arg7[%c1_52, %c0_53, %c0_54] : memref<4x32x8xbf16, #tpu.memory_space<vmem>>, vector<1x32x8xbf16>
    %68 = vector.shape_cast %67 : vector<1x32x8xbf16> to vector<32x8xbf16>
    %cst_55 = arith.constant dense<0.000000e+00> : vector<8x8xf32>
    %69 = tpu.matmul %5, %68, %cst_55 {dimension_numbers = #tpu.dot_dimension_numbers<[1], [0], [0], [1], [0, 0, 1, 1], [], []>} : vector<8x32xbf16>, vector<32x8xbf16>, vector<8x8xf32> -> vector<8x8xf32>
    %c1_56 = arith.constant 1 : index
    %c0_57 = arith.constant 0 : index
    %c0_58 = arith.constant 0 : index
    %70 = vector.load %arg10[%c1_56, %c0_57, %c0_58] : memref<4x1x8xf32, #tpu.memory_space<vmem>>, vector<1x1x8xf32>
    %71 = vector.shape_cast %70 : vector<1x1x8xf32> to vector<1x8xf32>
    %72 = vector.broadcast %71 : vector<1x8xf32> to vector<8x8xf32>
    %73 = arith.addf %69, %72 : vector<8x8xf32>
    %cst_59 = arith.constant 0.353553385 : f32
    %74 = vector.broadcast %cst_59 : f32 to vector<8x8xf32>
    %75 = arith.mulf %59, %74 : vector<8x8xf32>
    %76 = arith.truncf %75 : vector<8x8xf32> to vector<8x8xbf16>
    %77 = arith.truncf %66 : vector<8x8xf32> to vector<8x8xbf16>
    %cst_60 = arith.constant dense<0.000000e+00> : vector<8x8xf32>
    %78 = tpu.matmul %76, %77, %cst_60 {dimension_numbers = #tpu.dot_dimension_numbers<[1], [1], [0], [0], [0, 0, 1, 0], [], []>} : vector<8x8xbf16>, vector<8x8xbf16>, vector<8x8xf32> -> vector<8x8xf32>
    %cst_61 = arith.constant dense<0xFF800000> : vector<8xf32>
    %79 = vector.multi_reduction <maximumf>, %78, %cst_61 [1] : vector<8x8xf32> to vector<8xf32>
    %80 = vector.shape_cast %79 : vector<8xf32> to vector<8x1xf32>
    %81 = vector.broadcast %80 : vector<8x1xf32> to vector<8x8xf32>
    %82 = arith.subf %78, %81 : vector<8x8xf32>
    %83 = math.exp %82 : vector<8x8xf32>
    %cst_62 = arith.constant dense<0.000000e+00> : vector<8xf32>
    %84 = vector.multi_reduction <add>, %83, %cst_62 [1] : vector<8x8xf32> to vector<8xf32>
    %85 = vector.shape_cast %84 : vector<8xf32> to vector<8x1xf32>
    %86 = tpu.reciprocal %85 {approx = true} : vector<8x1xf32> -> vector<8x1xf32>
    %87 = vector.broadcast %86 : vector<8x1xf32> to vector<8x8xf32>
    %88 = arith.mulf %83, %87 : vector<8x8xf32>
    %89 = arith.addf %44, %88 : vector<8x8xf32>
    %90 = arith.truncf %88 : vector<8x8xf32> to vector<8x8xbf16>
    %91 = arith.truncf %73 : vector<8x8xf32> to vector<8x8xbf16>
    %cst_63 = arith.constant dense<0.000000e+00> : vector<8x8xf32>
    %92 = tpu.matmul %90, %91, %cst_63 {dimension_numbers = #tpu.dot_dimension_numbers<[1], [0], [0], [1], [0, 0, 1, 1], [], []>} : vector<8x8xbf16>, vector<8x8xbf16>, vector<8x8xf32> -> vector<8x8xf32>
    %93 = arith.truncf %92 : vector<8x8xf32> to vector<8x8xbf16>
    %c1_64 = arith.constant 1 : index
    %c0_65 = arith.constant 0 : index
    %c0_66 = arith.constant 0 : index
    %94 = vector.load %arg11[%c1_64, %c0_65, %c0_66] : memref<4x8x32xbf16, #tpu.memory_space<vmem>>, vector<1x8x32xbf16>
    %95 = vector.shape_cast %94 : vector<1x8x32xbf16> to vector<8x32xbf16>
    %cst_67 = arith.constant dense<0.000000e+00> : vector<8x32xf32>
    %96 = tpu.matmul %93, %95, %cst_67 {dimension_numbers = #tpu.dot_dimension_numbers<[1], [0], [0], [1], [0, 0, 1, 1], [], []>} : vector<8x8xbf16>, vector<8x32xbf16>, vector<8x32xf32> -> vector<8x32xf32>
    %97 = arith.addf %52, %96 : vector<8x32xf32>
    %c2 = arith.constant 2 : index
    %c0_68 = arith.constant 0 : index
    %c0_69 = arith.constant 0 : index
    %98 = vector.load %arg5[%c2, %c0_68, %c0_69] : memref<4x32x8xbf16, #tpu.memory_space<vmem>>, vector<1x32x8xbf16>
    %99 = vector.shape_cast %98 : vector<1x32x8xbf16> to vector<32x8xbf16>
    %cst_70 = arith.constant dense<0.000000e+00> : vector<8x8xf32>
    %100 = tpu.matmul %1, %99, %cst_70 {dimension_numbers = #tpu.dot_dimension_numbers<[1], [0], [0], [1], [0, 0, 1, 1], [], []>} : vector<8x32xbf16>, vector<32x8xbf16>, vector<8x8xf32> -> vector<8x8xf32>
    %c2_71 = arith.constant 2 : index
    %c0_72 = arith.constant 0 : index
    %c0_73 = arith.constant 0 : index
    %101 = vector.load %arg8[%c2_71, %c0_72, %c0_73] : memref<4x1x8xf32, #tpu.memory_space<vmem>>, vector<1x1x8xf32>
    %102 = vector.shape_cast %101 : vector<1x1x8xf32> to vector<1x8xf32>
    %103 = vector.broadcast %102 : vector<1x8xf32> to vector<8x8xf32>
    %104 = arith.addf %100, %103 : vector<8x8xf32>
    %c2_74 = arith.constant 2 : index
    %c0_75 = arith.constant 0 : index
    %c0_76 = arith.constant 0 : index
    %105 = vector.load %arg6[%c2_74, %c0_75, %c0_76] : memref<4x32x8xbf16, #tpu.memory_space<vmem>>, vector<1x32x8xbf16>
    %106 = vector.shape_cast %105 : vector<1x32x8xbf16> to vector<32x8xbf16>
    %cst_77 = arith.constant dense<0.000000e+00> : vector<8x8xf32>
    %107 = tpu.matmul %3, %106, %cst_77 {dimension_numbers = #tpu.dot_dimension_numbers<[1], [0], [0], [1], [0, 0, 1, 1], [], []>} : vector<8x32xbf16>, vector<32x8xbf16>, vector<8x8xf32> -> vector<8x8xf32>
    %c2_78 = arith.constant 2 : index
    %c0_79 = arith.constant 0 : index
    %c0_80 = arith.constant 0 : index
    %108 = vector.load %arg9[%c2_78, %c0_79, %c0_80] : memref<4x1x8xf32, #tpu.memory_space<vmem>>, vector<1x1x8xf32>
    %109 = vector.shape_cast %108 : vector<1x1x8xf32> to vector<1x8xf32>
    %110 = vector.broadcast %109 : vector<1x8xf32> to vector<8x8xf32>
    %111 = arith.addf %107, %110 : vector<8x8xf32>
    %c2_81 = arith.constant 2 : index
    %c0_82 = arith.constant 0 : index
    %c0_83 = arith.constant 0 : index
    %112 = vector.load %arg7[%c2_81, %c0_82, %c0_83] : memref<4x32x8xbf16, #tpu.memory_space<vmem>>, vector<1x32x8xbf16>
    %113 = vector.shape_cast %112 : vector<1x32x8xbf16> to vector<32x8xbf16>
    %cst_84 = arith.constant dense<0.000000e+00> : vector<8x8xf32>
    %114 = tpu.matmul %5, %113, %cst_84 {dimension_numbers = #tpu.dot_dimension_numbers<[1], [0], [0], [1], [0, 0, 1, 1], [], []>} : vector<8x32xbf16>, vector<32x8xbf16>, vector<8x8xf32> -> vector<8x8xf32>
    %c2_85 = arith.constant 2 : index
    %c0_86 = arith.constant 0 : index
    %c0_87 = arith.constant 0 : index
    %115 = vector.load %arg10[%c2_85, %c0_86, %c0_87] : memref<4x1x8xf32, #tpu.memory_space<vmem>>, vector<1x1x8xf32>
    %116 = vector.shape_cast %115 : vector<1x1x8xf32> to vector<1x8xf32>
    %117 = vector.broadcast %116 : vector<1x8xf32> to vector<8x8xf32>
    %118 = arith.addf %114, %117 : vector<8x8xf32>
    %cst_88 = arith.constant 0.353553385 : f32
    %119 = vector.broadcast %cst_88 : f32 to vector<8x8xf32>
    %120 = arith.mulf %104, %119 : vector<8x8xf32>
    %121 = arith.truncf %120 : vector<8x8xf32> to vector<8x8xbf16>
    %122 = arith.truncf %111 : vector<8x8xf32> to vector<8x8xbf16>
    %cst_89 = arith.constant dense<0.000000e+00> : vector<8x8xf32>
    %123 = tpu.matmul %121, %122, %cst_89 {dimension_numbers = #tpu.dot_dimension_numbers<[1], [1], [0], [0], [0, 0, 1, 0], [], []>} : vector<8x8xbf16>, vector<8x8xbf16>, vector<8x8xf32> -> vector<8x8xf32>
    %cst_90 = arith.constant dense<0xFF800000> : vector<8xf32>
    %124 = vector.multi_reduction <maximumf>, %123, %cst_90 [1] : vector<8x8xf32> to vector<8xf32>
    %125 = vector.shape_cast %124 : vector<8xf32> to vector<8x1xf32>
    %126 = vector.broadcast %125 : vector<8x1xf32> to vector<8x8xf32>
    %127 = arith.subf %123, %126 : vector<8x8xf32>
    %128 = math.exp %127 : vector<8x8xf32>
    %cst_91 = arith.constant dense<0.000000e+00> : vector<8xf32>
    %129 = vector.multi_reduction <add>, %128, %cst_91 [1] : vector<8x8xf32> to vector<8xf32>
    %130 = vector.shape_cast %129 : vector<8xf32> to vector<8x1xf32>
    %131 = tpu.reciprocal %130 {approx = true} : vector<8x1xf32> -> vector<8x1xf32>
    %132 = vector.broadcast %131 : vector<8x1xf32> to vector<8x8xf32>
    %133 = arith.mulf %128, %132 : vector<8x8xf32>
    %134 = arith.addf %89, %133 : vector<8x8xf32>
    %135 = arith.truncf %133 : vector<8x8xf32> to vector<8x8xbf16>
    %136 = arith.truncf %118 : vector<8x8xf32> to vector<8x8xbf16>
    %cst_92 = arith.constant dense<0.000000e+00> : vector<8x8xf32>
    %137 = tpu.matmul %135, %136, %cst_92 {dimension_numbers = #tpu.dot_dimension_numbers<[1], [0], [0], [1], [0, 0, 1, 1], [], []>} : vector<8x8xbf16>, vector<8x8xbf16>, vector<8x8xf32> -> vector<8x8xf32>
    %138 = arith.truncf %137 : vector<8x8xf32> to vector<8x8xbf16>
    %c2_93 = arith.constant 2 : index
    %c0_94 = arith.constant 0 : index
    %c0_95 = arith.constant 0 : index
    %139 = vector.load %arg11[%c2_93, %c0_94, %c0_95] : memref<4x8x32xbf16, #tpu.memory_space<vmem>>, vector<1x8x32xbf16>
    %140 = vector.shape_cast %139 : vector<1x8x32xbf16> to vector<8x32xbf16>
    %cst_96 = arith.constant dense<0.000000e+00> : vector<8x32xf32>
    %141 = tpu.matmul %138, %140, %cst_96 {dimension_numbers = #tpu.dot_dimension_numbers<[1], [0], [0], [1], [0, 0, 1, 1], [], []>} : vector<8x8xbf16>, vector<8x32xbf16>, vector<8x32xf32> -> vector<8x32xf32>
    %142 = arith.addf %97, %141 : vector<8x32xf32>
    %c3 = arith.constant 3 : index
    %c0_97 = arith.constant 0 : index
    %c0_98 = arith.constant 0 : index
    %143 = vector.load %arg5[%c3, %c0_97, %c0_98] : memref<4x32x8xbf16, #tpu.memory_space<vmem>>, vector<1x32x8xbf16>
    %144 = vector.shape_cast %143 : vector<1x32x8xbf16> to vector<32x8xbf16>
    %cst_99 = arith.constant dense<0.000000e+00> : vector<8x8xf32>
    %145 = tpu.matmul %1, %144, %cst_99 {dimension_numbers = #tpu.dot_dimension_numbers<[1], [0], [0], [1], [0, 0, 1, 1], [], []>} : vector<8x32xbf16>, vector<32x8xbf16>, vector<8x8xf32> -> vector<8x8xf32>
    %c3_100 = arith.constant 3 : index
    %c0_101 = arith.constant 0 : index
    %c0_102 = arith.constant 0 : index
    %146 = vector.load %arg8[%c3_100, %c0_101, %c0_102] : memref<4x1x8xf32, #tpu.memory_space<vmem>>, vector<1x1x8xf32>
    %147 = vector.shape_cast %146 : vector<1x1x8xf32> to vector<1x8xf32>
    %148 = vector.broadcast %147 : vector<1x8xf32> to vector<8x8xf32>
    %149 = arith.addf %145, %148 : vector<8x8xf32>
    %c3_103 = arith.constant 3 : index
    %c0_104 = arith.constant 0 : index
    %c0_105 = arith.constant 0 : index
    %150 = vector.load %arg6[%c3_103, %c0_104, %c0_105] : memref<4x32x8xbf16, #tpu.memory_space<vmem>>, vector<1x32x8xbf16>
    %151 = vector.shape_cast %150 : vector<1x32x8xbf16> to vector<32x8xbf16>
    %cst_106 = arith.constant dense<0.000000e+00> : vector<8x8xf32>
    %152 = tpu.matmul %3, %151, %cst_106 {dimension_numbers = #tpu.dot_dimension_numbers<[1], [0], [0], [1], [0, 0, 1, 1], [], []>} : vector<8x32xbf16>, vector<32x8xbf16>, vector<8x8xf32> -> vector<8x8xf32>
    %c3_107 = arith.constant 3 : index
    %c0_108 = arith.constant 0 : index
    %c0_109 = arith.constant 0 : index
    %153 = vector.load %arg9[%c3_107, %c0_108, %c0_109] : memref<4x1x8xf32, #tpu.memory_space<vmem>>, vector<1x1x8xf32>
    %154 = vector.shape_cast %153 : vector<1x1x8xf32> to vector<1x8xf32>
    %155 = vector.broadcast %154 : vector<1x8xf32> to vector<8x8xf32>
    %156 = arith.addf %152, %155 : vector<8x8xf32>
    %c3_110 = arith.constant 3 : index
    %c0_111 = arith.constant 0 : index
    %c0_112 = arith.constant 0 : index
    %157 = vector.load %arg7[%c3_110, %c0_111, %c0_112] : memref<4x32x8xbf16, #tpu.memory_space<vmem>>, vector<1x32x8xbf16>
    %158 = vector.shape_cast %157 : vector<1x32x8xbf16> to vector<32x8xbf16>
    %cst_113 = arith.constant dense<0.000000e+00> : vector<8x8xf32>
    %159 = tpu.matmul %5, %158, %cst_113 {dimension_numbers = #tpu.dot_dimension_numbers<[1], [0], [0], [1], [0, 0, 1, 1], [], []>} : vector<8x32xbf16>, vector<32x8xbf16>, vector<8x8xf32> -> vector<8x8xf32>
    %c3_114 = arith.constant 3 : index
    %c0_115 = arith.constant 0 : index
    %c0_116 = arith.constant 0 : index
    %160 = vector.load %arg10[%c3_114, %c0_115, %c0_116] : memref<4x1x8xf32, #tpu.memory_space<vmem>>, vector<1x1x8xf32>
    %161 = vector.shape_cast %160 : vector<1x1x8xf32> to vector<1x8xf32>
    %162 = vector.broadcast %161 : vector<1x8xf32> to vector<8x8xf32>
    %163 = arith.addf %159, %162 : vector<8x8xf32>
    %cst_117 = arith.constant 0.353553385 : f32
    %164 = vector.broadcast %cst_117 : f32 to vector<8x8xf32>
    %165 = arith.mulf %149, %164 : vector<8x8xf32>
    %166 = arith.truncf %165 : vector<8x8xf32> to vector<8x8xbf16>
    %167 = arith.truncf %156 : vector<8x8xf32> to vector<8x8xbf16>
    %cst_118 = arith.constant dense<0.000000e+00> : vector<8x8xf32>
    %168 = tpu.matmul %166, %167, %cst_118 {dimension_numbers = #tpu.dot_dimension_numbers<[1], [1], [0], [0], [0, 0, 1, 0], [], []>} : vector<8x8xbf16>, vector<8x8xbf16>, vector<8x8xf32> -> vector<8x8xf32>
    %cst_119 = arith.constant dense<0xFF800000> : vector<8xf32>
    %169 = vector.multi_reduction <maximumf>, %168, %cst_119 [1] : vector<8x8xf32> to vector<8xf32>
    %170 = vector.shape_cast %169 : vector<8xf32> to vector<8x1xf32>
    %171 = vector.broadcast %170 : vector<8x1xf32> to vector<8x8xf32>
    %172 = arith.subf %168, %171 : vector<8x8xf32>
    %173 = math.exp %172 : vector<8x8xf32>
    %cst_120 = arith.constant dense<0.000000e+00> : vector<8xf32>
    %174 = vector.multi_reduction <add>, %173, %cst_120 [1] : vector<8x8xf32> to vector<8xf32>
    %175 = vector.shape_cast %174 : vector<8xf32> to vector<8x1xf32>
    %176 = tpu.reciprocal %175 {approx = true} : vector<8x1xf32> -> vector<8x1xf32>
    %177 = vector.broadcast %176 : vector<8x1xf32> to vector<8x8xf32>
    %178 = arith.mulf %173, %177 : vector<8x8xf32>
    %179 = arith.addf %134, %178 : vector<8x8xf32>
    %180 = arith.truncf %178 : vector<8x8xf32> to vector<8x8xbf16>
    %181 = arith.truncf %163 : vector<8x8xf32> to vector<8x8xbf16>
    %cst_121 = arith.constant dense<0.000000e+00> : vector<8x8xf32>
    %182 = tpu.matmul %180, %181, %cst_121 {dimension_numbers = #tpu.dot_dimension_numbers<[1], [0], [0], [1], [0, 0, 1, 1], [], []>} : vector<8x8xbf16>, vector<8x8xbf16>, vector<8x8xf32> -> vector<8x8xf32>
    %183 = arith.truncf %182 : vector<8x8xf32> to vector<8x8xbf16>
    %c3_122 = arith.constant 3 : index
    %c0_123 = arith.constant 0 : index
    %c0_124 = arith.constant 0 : index
    %184 = vector.load %arg11[%c3_122, %c0_123, %c0_124] : memref<4x8x32xbf16, #tpu.memory_space<vmem>>, vector<1x8x32xbf16>
    %185 = vector.shape_cast %184 : vector<1x8x32xbf16> to vector<8x32xbf16>
    %cst_125 = arith.constant dense<0.000000e+00> : vector<8x32xf32>
    %186 = tpu.matmul %183, %185, %cst_125 {dimension_numbers = #tpu.dot_dimension_numbers<[1], [0], [0], [1], [0, 0, 1, 1], [], []>} : vector<8x8xbf16>, vector<8x32xbf16>, vector<8x32xf32> -> vector<8x32xf32>
    %187 = arith.addf %142, %186 : vector<8x32xf32>
    %c0_126 = arith.constant 0 : index
    %c0_127 = arith.constant 0 : index
    %188 = vector.load %arg12[%c0_126, %c0_127] : memref<1x32xf32, #tpu.memory_space<vmem>>, vector<1x32xf32>
    %189 = vector.broadcast %188 : vector<1x32xf32> to vector<8x32xf32>
    %190 = arith.addf %187, %189 : vector<8x32xf32>
    %c0_128 = arith.constant 0 : index
    %c0_129 = arith.constant 0 : index
    %c0_130 = arith.constant 0 : index
    %191 = vector.load %arg13[%c0_128, %c0_129, %c0_130] : memref<1x8x32xf32, #tpu.memory_space<vmem>>, vector<1x8x32xf32>
    %192 = vector.shape_cast %191 : vector<1x8x32xf32> to vector<8x32xf32>
    %193 = vector.shape_cast %190 : vector<8x32xf32> to vector<1x8x32xf32>
    tpu.vector_store %arg13[%c0_128, %c0_129, %c0_130], %193 {strides = array<i32>} : memref<1x8x32xf32, #tpu.memory_space<vmem>>, vector<1x8x32xf32>,
    %cst_131 = arith.constant 2.500000e-01 : f32
    %194 = vector.broadcast %cst_131 : f32 to vector<8x8xf32>
    %195 = arith.mulf %179, %194 : vector<8x8xf32>
    %c0_132 = arith.constant 0 : index
    %c0_133 = arith.constant 0 : index
    %c0_134 = arith.constant 0 : index
    %196 = vector.load %arg14[%c0_132, %c0_133, %c0_134] : memref<1x8x8xf32, #tpu.memory_space<vmem>>, vector<1x8x8xf32>
    %197 = vector.shape_cast %196 : vector<1x8x8xf32> to vector<8x8xf32>
    %198 = vector.shape_cast %195 : vector<8x8xf32> to vector<1x8x8xf32>
    tpu.vector_store %arg14[%c0_132, %c0_133, %c0_134], %198 {strides = array<i32>} : memref<1x8x8xf32, #tpu.memory_space<vmem>>, vector<1x8x8xf32>,
    return
  }
  func.func @transform_0(%arg0: i32, %arg1: i32) -> (i32, i32, i32) {
    %c0_i32 = arith.constant 0 : i32
    %c0_i32_0 = arith.constant 0 : i32
    return %arg0, %arg1, %c0_i32 : i32, i32, i32
  }
  func.func @transform_1(%arg0: i32, %arg1: i32) -> (i32, i32, i32) {
    %c0_i32 = arith.constant 0 : i32
    %c0_i32_0 = arith.constant 0 : i32
    %c0_i32_1 = arith.constant 0 : i32
    return %arg0, %c0_i32, %c0_i32_0 : i32, i32, i32
  }
  func.func @transform_2(%arg0: i32, %arg1: i32) -> (i32, i32, i32) {
    %c0_i32 = arith.constant 0 : i32
    %c0_i32_0 = arith.constant 0 : i32
    %c0_i32_1 = arith.constant 0 : i32
    return %arg0, %c0_i32, %c0_i32_0 : i32, i32, i32
  }
  func.func @transform_3(%arg0: i32, %arg1: i32) -> (i32, i32, i32) {
    %c0_i32 = arith.constant 0 : i32
    %c0_i32_0 = arith.constant 0 : i32
    %c0_i32_1 = arith.constant 0 : i32
    %c0_i32_2 = arith.constant 0 : i32
    return %c0_i32, %c0_i32_0, %c0_i32_1 : i32, i32, i32
  }
  func.func @transform_4(%arg0: i32, %arg1: i32) -> (i32, i32, i32) {
    %c0_i32 = arith.constant 0 : i32
    %c0_i32_0 = arith.constant 0 : i32
    %c0_i32_1 = arith.constant 0 : i32
    %c0_i32_2 = arith.constant 0 : i32
    return %c0_i32, %c0_i32_0, %c0_i32_1 : i32, i32, i32
  }
  func.func @transform_5(%arg0: i32, %arg1: i32) -> (i32, i32, i32) {
    %c0_i32 = arith.constant 0 : i32
    %c0_i32_0 = arith.constant 0 : i32
    %c0_i32_1 = arith.constant 0 : i32
    %c0_i32_2 = arith.constant 0 : i32
    return %c0_i32, %c0_i32_0, %c0_i32_1 : i32, i32, i32
  }
  func.func @transform_6(%arg0: i32, %arg1: i32) -> (i32, i32, i32) {
    %c0_i32 = arith.constant 0 : i32
    %c0_i32_0 = arith.constant 0 : i32
    %c0_i32_1 = arith.constant 0 : i32
    %c0_i32_2 = arith.constant 0 : i32
    return %c0_i32, %c0_i32_0, %c0_i32_1 : i32, i32, i32
  }
  func.func @transform_7(%arg0: i32, %arg1: i32) -> (i32, i32, i32) {
    %c0_i32 = arith.constant 0 : i32
    %c0_i32_0 = arith.constant 0 : i32
    %c0_i32_1 = arith.constant 0 : i32
    %c0_i32_2 = arith.constant 0 : i32
    return %c0_i32, %c0_i32_0, %c0_i32_1 : i32, i32, i32
  }
  func.func @transform_8(%arg0: i32, %arg1: i32) -> (i32, i32, i32) {
    %c0_i32 = arith.constant 0 : i32
    %c0_i32_0 = arith.constant 0 : i32
    %c0_i32_1 = arith.constant 0 : i32
    %c0_i32_2 = arith.constant 0 : i32
    return %c0_i32, %c0_i32_0, %c0_i32_1 : i32, i32, i32
  }
  func.func @transform_9(%arg0: i32, %arg1: i32) -> (i32, i32, i32) {
    %c0_i32 = arith.constant 0 : i32
    %c0_i32_0 = arith.constant 0 : i32
    %c0_i32_1 = arith.constant 0 : i32
    %c0_i32_2 = arith.constant 0 : i32
    return %c0_i32, %c0_i32_0, %c0_i32_1 : i32, i32, i32
  }
  func.func @transform_10(%arg0: i32, %arg1: i32) -> (i32, i32) {
    %c0_i32 = arith.constant 0 : i32
    %c0_i32_0 = arith.constant 0 : i32
    %c0_i32_1 = arith.constant 0 : i32
    return %c0_i32, %c0_i32_0 : i32, i32
  }
  func.func @transform_11(%arg0: i32, %arg1: i32) -> (i32, i32, i32) {
    %c0_i32 = arith.constant 0 : i32
    %c0_i32_0 = arith.constant 0 : i32
    return %arg0, %arg1, %c0_i32 : i32, i32, i32
  }
  func.func @transform_12(%arg0: i32, %arg1: i32) -> (i32, i32, i32) {
    %c0_i32 = arith.constant 0 : i32
    %c0_i32_0 = arith.constant 0 : i32
    return %arg0, %arg1, %c0_i32 : i32, i32, i32
  }
}

</mosaic_0001>

<llo_original>
// kernel: tpu_custom_call.1
$region0: #{tpu_custom_call.1}
  #allocation0 [shape = 'u32[]', space=smem, size = 0x4, offset = 0x4, fixed_abs, tag = 'smem constant byte address 0x4 - core index']
  #allocation1 [shape = 'u32[144,128]{1,0:T(1,128)}', space=vmem, size = 0x12000, scoped, tag = 'internal scratch']
  %s0 = inlined_call_operand.hbm [shape: bf16[2,8,32], index: 0, kind: input, shape index: {}]
  %s1 = inlined_call_operand.hbm [shape: bf16[2,8,32], index: 1, kind: input, shape index: {}]
  %s2 = inlined_call_operand.hbm [shape: bf16[2,8,32], index: 2, kind: input, shape index: {}]
  %s3 = inlined_call_operand.hbm [shape: bf16[4,32,8], index: 3, kind: input, shape index: {}]
  %s4 = inlined_call_operand.hbm [shape: bf16[4,32,8], index: 4, kind: input, shape index: {}]
  %s5 = inlined_call_operand.hbm [shape: bf16[4,32,8], index: 5, kind: input, shape index: {}]
  %s6 = inlined_call_operand.hbm [shape: f32[4,1,8], index: 6, kind: input, shape index: {}]
  %s7 = inlined_call_operand.hbm [shape: f32[4,1,8], index: 7, kind: input, shape index: {}]
  %s8 = inlined_call_operand.hbm [shape: f32[4,1,8], index: 8, kind: input, shape index: {}]
  %s9 = inlined_call_operand.hbm [shape: bf16[4,8,32], index: 9, kind: input, shape index: {}]
  %s10 = inlined_call_operand.hbm [shape: f32[1,32], index: 10, kind: input, shape index: {}]
  %s11 = inlined_call_operand.hbm [shape: f32[2,8,32], index: 11, kind: output, shape index: {0}]
  %s12 = inlined_call_operand.hbm [shape: f32[2,8,8], index: 12, kind: output, shape index: {1}]
  %13 = xla_tuple %s11, %s12
  %s14 = sld [smem:[#allocation0]]
  $region129: #{tpu_custom_call.1} parent=0
    _
  %s16 = ssub.s32 1, %s14
  %s17 = scalar_select 0, %s16, %s14
  $region1: #{tpu_custom_call.1} parent=0
    #allocation2 [shape = 'u8[4096]{0}', space=vmem, size = 0x1000, scoped, tag = 'input window, operand 0']
    #allocation3 [shape = 's32[2]{0}', space=sflag, size = 0x8, scoped, tag = 'scoped memory for tpu_custom_call.1']
    #allocation4 [shape = 's32[2]{0}', space=sflag, size = 0x8, scoped, tag = 'scoped memory for tpu_custom_call.1']
    #allocation5 [shape = 'u8[4096]{0}', space=vmem, size = 0x1000, scoped, tag = 'input window, operand 1']
    #allocation6 [shape = 's32[2]{0}', space=sflag, size = 0x8, scoped, tag = 'scoped memory for tpu_custom_call.1']
    #allocation7 [shape = 'u8[4096]{0}', space=vmem, size = 0x1000, scoped, tag = 'input window, operand 2']
    #allocation8 [shape = 'u8[32768]{0}', space=vmem, size = 0x8000, scoped, tag = 'input window, operand 3, single buffered']
    #allocation9 [shape = 's32[1]{0}', space=sflag, size = 0x4, scoped, tag = 'scoped memory for tpu_custom_call.1']
    #allocation10 [shape = 'u8[32768]{0}', space=vmem, size = 0x8000, scoped, tag = 'input window, operand 4, single buffered']
    #allocation11 [shape = 'u8[32768]{0}', space=vmem, size = 0x8000, scoped, tag = 'input window, operand 5, single buffered']
    #allocation12 [shape = 's32[1]{0}', space=sflag, size = 0x4, scoped, tag = 'scoped memory for tpu_custom_call.1']
    #allocation13 [shape = 'u8[2048]{0}', space=vmem, size = 0x800, scoped, tag = 'input window, operand 6, single buffered']
    #allocation14 [shape = 'u8[2048]{0}', space=vmem, size = 0x800, scoped, tag = 'input window, operand 7, single buffered']
    #allocation15 [shape = 's32[1]{0}', space=sflag, size = 0x4, scoped, tag = 'scoped memory for tpu_custom_call.1']
    #allocation16 [shape = 'u8[2048]{0}', space=vmem, size = 0x800, scoped, tag = 'input window, operand 8, single buffered']
    #allocation17 [shape = 'u8[8192]{0}', space=vmem, size = 0x2000, scoped, tag = 'input window, operand 9, single buffered']
    #allocation18 [shape = 's32[1]{0}', space=sflag, size = 0x4, scoped, tag = 'scoped memory for tpu_custom_call.1']
    #allocation19 [shape = 'u8[512]{0}', space=vmem, size = 0x400, scoped, tag = 'input window, operand 10, single buffered']
    #allocation20 [shape = 'u8[8192]{0}', space=vmem, size = 0x2000, scoped, tag = 'output window, operand 0']
    #allocation21 [shape = 'u8[8192]{0}', space=vmem, size = 0x2000, scoped, tag = 'output window, operand 1']
    #allocation22 [shape = 's32[2]{0}', space=sflag, size = 0x8, scoped, tag = 'scoped memory for tpu_custom_call.1']
    %18 = vsyncpa [#allocation3], 0
    %s19 = scalar_lea.sflag [#allocation3], 1
    %20 = vsyncpa %s19, 0
    %21 = vsyncpa [#allocation6], 0
    %s22 = scalar_lea.sflag [#allocation6], 1
    %23 = vsyncpa %s22, 0
    %24 = vsyncpa [#allocation9], 0
    %25 = vsyncpa [#allocation12], 0
    %26 = vsyncpa [#allocation15], 0
    %27 = vsyncpa [#allocation18], 0
    %28 = vsyncpa [#allocation4], 0
    %s29 = scalar_lea.sflag [#allocation4], 1
    %30 = vsyncpa %s29, 0
    %31 = vsyncpa [#allocation22], 0
    %s32 = scalar_lea.sflag [#allocation22], 1
    %33 = vsyncpa %s32, 0
    loop: start=0, step=1, limit=4
    $region2: #{tpu_custom_call.1} parent=1 // loop_pre_header
      _
    $region3: #{tpu_custom_call.1} parent=1 // loop_header
      %s35 = sphi 0, %s39
      %p36 = scmp.ge.s32.totalorder %s35, 4
      %s42 = sphi 0, %s54
      %s43 = sphi 0, %s50
      %s44 = sphi 0, %s42
      %s45 = sphi 0, %s43
      %s46 = sphi 0, %s44
      %s47 = sphi 0, %s45
      %s59 = sphi 0, %s61
      %s62 = sphi 0, %s59
      %s63 = sphi 0, %s62
      %s79 = sphi 0, %s63
      %s85 = sphi 0, %s87
      %s88 = sphi 0, %s85
      %s89 = sphi 0, %s88
      %s105 = sphi 0, %s89
      %s111 = sphi 0, %s113
      %s114 = sphi 0, %s111
      %s115 = sphi 0, %s114
      %s131 = sphi 0, %s115
      %s135 = sphi 0, %s135
      %s137 = sphi 0, %s135
      %s138 = sphi 0, %s137
      %s152 = sphi 0, %s138
      %s156 = sphi 0, %s156
      %s158 = sphi 0, %s156
      %s159 = sphi 0, %s158
      %s173 = sphi 0, %s159
      %s177 = sphi 0, %s177
      %s179 = sphi 0, %s177
      %s180 = sphi 0, %s179
      %s194 = sphi 0, %s180
      %s198 = sphi 0, %s198
      %s200 = sphi 0, %s198
      %s201 = sphi 0, %s200
      %s215 = sphi 0, %s201
      %s219 = sphi 0, %s219
      %s221 = sphi 0, %s219
      %s222 = sphi 0, %s221
      %s236 = sphi 0, %s222
      %s240 = sphi 0, %s240
      %s242 = sphi 0, %s240
      %s243 = sphi 0, %s242
      %s257 = sphi 0, %s243
      %s261 = sphi 0, %s261
      %s263 = sphi 0, %s261
      %s264 = sphi 0, %s263
      %s278 = sphi 0, %s264
      %s282 = sphi 0, %s282
      %s284 = sphi 0, %s282
      %s285 = sphi 0, %s284
      %s299 = sphi 0, %s285
      %s307 = sphi 0, %s309
      %s310 = sphi 0, %s307
      %s311 = sphi 0, %s310
      %s327 = sphi 0, %s311
      %s335 = sphi 0, %s337
      %s338 = sphi 0, %s335
      %s339 = sphi 0, %s338
      %s355 = sphi 0, %s339
    $region4: #{tpu_custom_call.1} parent=1 // loop_header_branch
      %38 = sbr.rel (%p36) target = $region8
    $region5: #{tpu_custom_call.1} parent=1 // loop_body
      %s40 = ssub.s32 %s35, 1
      %s41 = ssub.s32 %s35, 2
      %s48 = sadd.s32 1, %s43
      %p49 = scmp.ge.s32.totalorder %s48, 1
      %s50 = scalar_select %p49, 0, %s48
      %s51 = sadd.s32 1, %s42
      %s52 = scalar_select %p49, %s51, %s42
      %p53 = scmp.ge.s32.totalorder %s52, 2
      %s54 = scalar_select %p53, 0, %s52
      %s55 = ssub.s32 %s42, %s54
      %s56 = ssub.s32 %s43, %s50
      %s57 = sor.u32 %s55, %s56
      %p58 = scmp.eq.s32.totalorder %s57, 0
      %s60 = sadd.s32 %s59, 1
      %s61 = scalar_select %p58, %s59, %s60
      %p64 = pneg %p58
      %p65 = scmp.eq.s32.totalorder %s35, 1
      %p66 = por %p64, %p65
      %p67 = scmp.ne.s32.totalorder %s59, %s62
      %p68 = scmp.eq.s32.totalorder %s35, 0
      %p69 = por %p67, %p68
      %p70 = scmp.ne.s32.totalorder %s59, %s62
      %p71 = scmp.eq.s32.totalorder %s40, 1
      %p72 = por %p70, %p71
      %p73 = scmp.ne.s32.totalorder %s62, %s63
      %p74 = scmp.eq.s32.totalorder %s40, 0
      %p75 = por %p73, %p74
      %p76 = scmp.ne.s32.totalorder %s62, %s63
      %p77 = scmp.eq.s32.totalorder %s41, 1
      %p78 = por %p76, %p77
      %p80 = scmp.ne.s32.totalorder %s63, %s79
      %p81 = scmp.eq.s32.totalorder %s41, 0
      %p82 = por %p80, %p81
      %s83 = ssub.s32 %s42, %s54
      %p84 = scmp.eq.s32.totalorder %s83, 0
      %s86 = sadd.s32 %s85, 1
      %s87 = scalar_select %p84, %s85, %s86
      %p90 = pneg %p84
      %p91 = scmp.eq.s32.totalorder %s35, 1
      %p92 = por %p90, %p91
      %p93 = scmp.ne.s32.totalorder %s85, %s88
      %p94 = scmp.eq.s32.totalorder %s35, 0
      %p95 = por %p93, %p94
      %p96 = scmp.ne.s32.totalorder %s85, %s88
      %p97 = scmp.eq.s32.totalorder %s40, 1
      %p98 = por %p96, %p97
      %p99 = scmp.ne.s32.totalorder %s88, %s89
      %p100 = scmp.eq.s32.totalorder %s40, 0
      %p101 = por %p99, %p100
      %p102 = scmp.ne.s32.totalorder %s88, %s89
      %p103 = scmp.eq.s32.totalorder %s41, 1
      %p104 = por %p102, %p103
      %p106 = scmp.ne.s32.totalorder %s89, %s105
      %p107 = scmp.eq.s32.totalorder %s41, 0
      %p108 = por %p106, %p107
      %s109 = ssub.s32 %s42, %s54
      %p110 = scmp.eq.s32.totalorder %s109, 0
      %s112 = sadd.s32 %s111, 1
      %s113 = scalar_select %p110, %s111, %s112
      %p116 = pneg %p110
      %p117 = scmp.eq.s32.totalorder %s35, 1
      %p118 = por %p116, %p117
      %p119 = scmp.ne.s32.totalorder %s111, %s114
      %p120 = scmp.eq.s32.totalorder %s35, 0
      %p121 = por %p119, %p120
      %p122 = scmp.ne.s32.totalorder %s111, %s114
      %p123 = scmp.eq.s32.totalorder %s40, 1
      %p124 = por %p122, %p123
      %p125 = scmp.ne.s32.totalorder %s114, %s115
      %p126 = scmp.eq.s32.totalorder %s40, 0
      %p127 = por %p125, %p126
      %p128 = scmp.ne.s32.totalorder %s114, %s115
      %p129 = scmp.eq.s32.totalorder %s41, 1
      %p130 = por %p128, %p129
      %p132 = scmp.ne.s32.totalorder %s115, %s131
      %p133 = scmp.eq.s32.totalorder %s41, 0
      %p134 = por %p132, %p133
      %s136 = sadd.s32 %s135, 1
      %p139 = scmp.eq.s32.totalorder %s35, 1
      %p140 = scmp.ne.s32.totalorder %s135, %s137
      %p141 = scmp.eq.s32.totalorder %s35, 0
      %p142 = por %p140, %p141
      %p143 = scmp.ne.s32.totalorder %s135, %s137
      %p144 = scmp.eq.s32.totalorder %s40, 1
      %p145 = por %p143, %p144
      %p146 = scmp.ne.s32.totalorder %s137, %s138
      %p147 = scmp.eq.s32.totalorder %s40, 0
      %p148 = por %p146, %p147
      %p149 = scmp.ne.s32.totalorder %s137, %s138
      %p150 = scmp.eq.s32.totalorder %s41, 1
      %p151 = por %p149, %p150
      %p153 = scmp.ne.s32.totalorder %s138, %s152
      %p154 = scmp.eq.s32.totalorder %s41, 0
      %p155 = por %p153, %p154
      %s157 = sadd.s32 %s156, 1
      %p160 = scmp.eq.s32.totalorder %s35, 1
      %p161 = scmp.ne.s32.totalorder %s156, %s158
      %p162 = scmp.eq.s32.totalorder %s35, 0
      %p163 = por %p161, %p162
      %p164 = scmp.ne.s32.totalorder %s156, %s158
      %p165 = scmp.eq.s32.totalorder %s40, 1
      %p166 = por %p164, %p165
      %p167 = scmp.ne.s32.totalorder %s158, %s159
      %p168 = scmp.eq.s32.totalorder %s40, 0
      %p169 = por %p167, %p168
      %p170 = scmp.ne.s32.totalorder %s158, %s159
      %p171 = scmp.eq.s32.totalorder %s41, 1
      %p172 = por %p170, %p171
      %p174 = scmp.ne.s32.totalorder %s159, %s173
      %p175 = scmp.eq.s32.totalorder %s41, 0
      %p176 = por %p174, %p175
      %s178 = sadd.s32 %s177, 1
      %p181 = scmp.eq.s32.totalorder %s35, 1
      %p182 = scmp.ne.s32.totalorder %s177, %s179
      %p183 = scmp.eq.s32.totalorder %s35, 0
      %p184 = por %p182, %p183
      %p185 = scmp.ne.s32.totalorder %s177, %s179
      %p186 = scmp.eq.s32.totalorder %s40, 1
      %p187 = por %p185, %p186
      %p188 = scmp.ne.s32.totalorder %s179, %s180
      %p189 = scmp.eq.s32.totalorder %s40, 0
      %p190 = por %p188, %p189
      %p191 = scmp.ne.s32.totalorder %s179, %s180
      %p192 = scmp.eq.s32.totalorder %s41, 1
      %p193 = por %p191, %p192
      %p195 = scmp.ne.s32.totalorder %s180, %s194
      %p196 = scmp.eq.s32.totalorder %s41, 0
      %p197 = por %p195, %p196
      %s199 = sadd.s32 %s198, 1
      %p202 = scmp.eq.s32.totalorder %s35, 1
      %p203 = scmp.ne.s32.totalorder %s198, %s200
      %p204 = scmp.eq.s32.totalorder %s35, 0
      %p205 = por %p203, %p204
      %p206 = scmp.ne.s32.totalorder %s198, %s200
      %p207 = scmp.eq.s32.totalorder %s40, 1
      %p208 = por %p206, %p207
      %p209 = scmp.ne.s32.totalorder %s200, %s201
      %p210 = scmp.eq.s32.totalorder %s40, 0
      %p211 = por %p209, %p210
      %p212 = scmp.ne.s32.totalorder %s200, %s201
      %p213 = scmp.eq.s32.totalorder %s41, 1
      %p214 = por %p212, %p213
      %p216 = scmp.ne.s32.totalorder %s201, %s215
      %p217 = scmp.eq.s32.totalorder %s41, 0
      %p218 = por %p216, %p217
      %s220 = sadd.s32 %s219, 1
      %p223 = scmp.eq.s32.totalorder %s35, 1
      %p224 = scmp.ne.s32.totalorder %s219, %s221
      %p225 = scmp.eq.s32.totalorder %s35, 0
      %p226 = por %p224, %p225
      %p227 = scmp.ne.s32.totalorder %s219, %s221
      %p228 = scmp.eq.s32.totalorder %s40, 1
      %p229 = por %p227, %p228
      %p230 = scmp.ne.s32.totalorder %s221, %s222
      %p231 = scmp.eq.s32.totalorder %s40, 0
      %p232 = por %p230, %p231
      %p233 = scmp.ne.s32.totalorder %s221, %s222
      %p234 = scmp.eq.s32.totalorder %s41, 1
      %p235 = por %p233, %p234
      %p237 = scmp.ne.s32.totalorder %s222, %s236
      %p238 = scmp.eq.s32.totalorder %s41, 0
      %p239 = por %p237, %p238
      %s241 = sadd.s32 %s240, 1
      %p244 = scmp.eq.s32.totalorder %s35, 1
      %p245 = scmp.ne.s32.totalorder %s240, %s242
      %p246 = scmp.eq.s32.totalorder %s35, 0
      %p247 = por %p245, %p246
      %p248 = scmp.ne.s32.totalorder %s240, %s242
      %p249 = scmp.eq.s32.totalorder %s40, 1
      %p250 = por %p248, %p249
      %p251 = scmp.ne.s32.totalorder %s242, %s243
      %p252 = scmp.eq.s32.totalorder %s40, 0
      %p253 = por %p251, %p252
      %p254 = scmp.ne.s32.totalorder %s242, %s243
      %p255 = scmp.eq.s32.totalorder %s41, 1
      %p256 = por %p254, %p255
      %p258 = scmp.ne.s32.totalorder %s243, %s257
      %p259 = scmp.eq.s32.totalorder %s41, 0
      %p260 = por %p258, %p259
      %s262 = sadd.s32 %s261, 1
      %p265 = scmp.eq.s32.totalorder %s35, 1
      %p266 = scmp.ne.s32.totalorder %s261, %s263
      %p267 = scmp.eq.s32.totalorder %s35, 0
      %p268 = por %p266, %p267
      %p269 = scmp.ne.s32.totalorder %s261, %s263
      %p270 = scmp.eq.s32.totalorder %s40, 1
      %p271 = por %p269, %p270
      %p272 = scmp.ne.s32.totalorder %s263, %s264
      %p273 = scmp.eq.s32.totalorder %s40, 0
      %p274 = por %p272, %p273
      %p275 = scmp.ne.s32.totalorder %s263, %s264
      %p276 = scmp.eq.s32.totalorder %s41, 1
      %p277 = por %p275, %p276
      %p279 = scmp.ne.s32.totalorder %s264, %s278
      %p280 = scmp.eq.s32.totalorder %s41, 0
      %p281 = por %p279, %p280
      %s283 = sadd.s32 %s282, 1
      %p286 = scmp.eq.s32.totalorder %s35, 1
      %p287 = scmp.ne.s32.totalorder %s282, %s284
      %p288 = scmp.eq.s32.totalorder %s35, 0
      %p289 = por %p287, %p288
      %p290 = scmp.ne.s32.totalorder %s282, %s284
      %p291 = scmp.eq.s32.totalorder %s40, 1
      %p292 = por %p290, %p291
      %p293 = scmp.ne.s32.totalorder %s284, %s285
      %p294 = scmp.eq.s32.totalorder %s40, 0
      %p295 = por %p293, %p294
      %p296 = scmp.ne.s32.totalorder %s284, %s285
      %p297 = scmp.eq.s32.totalorder %s41, 1
      %p298 = por %p296, %p297
      %p300 = scmp.ne.s32.totalorder %s285, %s299
      %p301 = scmp.eq.s32.totalorder %s41, 0
      %p302 = por %p300, %p301
      %s303 = ssub.s32 %s42, %s54
      %s304 = ssub.s32 %s43, %s50
      %s305 = sor.u32 %s303, %s304
      %p306 = scmp.eq.s32.totalorder %s305, 0
      %s308 = sadd.s32 %s307, 1
      %s309 = scalar_select %p306, %s307, %s308
      %p312 = pneg %p306
      %p313 = scmp.eq.s32.totalorder %s35, 1
      %p314 = por %p312, %p313
      %p315 = scmp.ne.s32.totalorder %s307, %s310
      %p316 = scmp.eq.s32.totalorder %s35, 0
      %p317 = por %p315, %p316
      %p318 = scmp.ne.s32.totalorder %s307, %s310
      %p319 = scmp.eq.s32.totalorder %s40, 1
      %p320 = por %p318, %p319
      %p321 = scmp.ne.s32.totalorder %s310, %s311
      %p322 = scmp.eq.s32.totalorder %s40, 0
      %p323 = por %p321, %p322
      %p324 = scmp.ne.s32.totalorder %s310, %s311
      %p325 = scmp.eq.s32.totalorder %s41, 1
      %p326 = por %p324, %p325
      %p328 = scmp.ne.s32.totalorder %s311, %s327
      %p329 = scmp.eq.s32.totalorder %s41, 0
      %p330 = por %p328, %p329
      %s331 = ssub.s32 %s42, %s54
      %s332 = ssub.s32 %s43, %s50
      %s333 = sor.u32 %s331, %s332
      %p334 = scmp.eq.s32.totalorder %s333, 0
      %s336 = sadd.s32 %s335, 1
      %s337 = scalar_select %p334, %s335, %s336
      %p340 = pneg %p334
      %p341 = scmp.eq.s32.totalorder %s35, 1
      %p342 = por %p340, %p341
      %p343 = scmp.ne.s32.totalorder %s335, %s338
      %p344 = scmp.eq.s32.totalorder %s35, 0
      %p345 = por %p343, %p344
      %p346 = scmp.ne.s32.totalorder %s335, %s338
      %p347 = scmp.eq.s32.totalorder %s40, 1
      %p348 = por %p346, %p347
      %p349 = scmp.ne.s32.totalorder %s338, %s339
      %p350 = scmp.eq.s32.totalorder %s40, 0
      %p351 = por %p349, %p350
      %p352 = scmp.ne.s32.totalorder %s338, %s339
      %p353 = scmp.eq.s32.totalorder %s41, 1
      %p354 = por %p352, %p353
      %p356 = scmp.ne.s32.totalorder %s339, %s355
      %p357 = scmp.eq.s32.totalorder %s41, 0
      %p358 = por %p356, %p357
      %p359 = scmp.le.s32.totalorder 1, %s35
      %p360 = scmp.lt.s32.totalorder %s35, 3
      %p361 = pnand %p359, %p360
      %p362 = pneg %p361
      // Predicated region
      $region9: #{tpu_custom_call.1} parent=5 // pred_check
        _
      $region10: #{tpu_custom_call.1} parent=5 // pred_check_branch
        %364 = sbr.rel (%p361) target = $region12
      $region11: #{tpu_custom_call.1} parent=5 // pred_region
        %s365 = ssub.s32 %s35, 1
        // Predicated region
        $region13: #{tpu_custom_call.1} parent=11 // pred_check
          %p366 = pneg %p148
        $region14: #{tpu_custom_call.1} parent=11 // pred_check_branch
          %368 = sbr.rel (%p366) target = $region16
        $region15: #{tpu_custom_call.1} parent=11 // pred_region
          %s370 = ssub.s32 1024, 1024
          %371 = vsyncadd [#allocation9], %s370
          %s372 = sshll.u32 [#allocation8], 4
          %s373 = int_to_ptr.vmem [resolvable:$true] %s372
          %378 = dma.hbm_to_vmem [thread:$0]  %s3, 1024, %s373, [#allocation9], 64, 64, 4
        $region16: #{tpu_custom_call.1} parent=11 // pred_fallthru
          _
        // Predicated region
        $region17: #{tpu_custom_call.1} parent=11 // pred_check
          %p379 = pneg %p169
        $region18: #{tpu_custom_call.1} parent=11 // pred_check_branch
          %381 = sbr.rel (%p379) target = $region20
        $region19: #{tpu_custom_call.1} parent=11 // pred_region
          %s383 = ssub.s32 1024, 1024
          %384 = vsyncadd [#allocation9], %s383
          %s385 = sshll.u32 [#allocation10], 4
          %s386 = int_to_ptr.vmem [resolvable:$true] %s385
          %391 = dma.hbm_to_vmem [thread:$0]  %s4, 1024, %s386, [#allocation9], 64, 64, 4
        $region20: #{tpu_custom_call.1} parent=11 // pred_fallthru
          _
        // Predicated region
        $region21: #{tpu_custom_call.1} parent=11 // pred_check
          %p392 = pneg %p190
        $region22: #{tpu_custom_call.1} parent=11 // pred_check_branch
          %394 = sbr.rel (%p392) target = $region24
        $region23: #{tpu_custom_call.1} parent=11 // pred_region
          %s396 = ssub.s32 1024, 1024
          %397 = vsyncadd [#allocation12], %s396
          %s398 = sshll.u32 [#allocation11], 4
          %s399 = int_to_ptr.vmem [resolvable:$true] %s398
          %404 = dma.hbm_to_vmem [thread:$0]  %s5, 1024, %s399, [#allocation12], 64, 64, 4
        $region24: #{tpu_custom_call.1} parent=11 // pred_fallthru
          _
        // Predicated region
        $region25: #{tpu_custom_call.1} parent=11 // pred_check
          %p405 = pneg %p211
        $region26: #{tpu_custom_call.1} parent=11 // pred_check_branch
          %407 = sbr.rel (%p405) target = $region28
        $region27: #{tpu_custom_call.1} parent=11 // pred_region
          %s409 = ssub.s32 64, 64
          %410 = vsyncadd [#allocation12], %s409
          %s411 = sshll.u32 [#allocation13], 4
          %s412 = int_to_ptr.vmem [resolvable:$true] %s411
          %417 = dma.hbm_to_vmem [thread:$0]  %s6, 64, %s412, [#allocation12], 16, 16, 1
        $region28: #{tpu_custom_call.1} parent=11 // pred_fallthru
          _
        // Predicated region
        $region29: #{tpu_custom_call.1} parent=11 // pred_check
          %p418 = pneg %p232
        $region30: #{tpu_custom_call.1} parent=11 // pred_check_branch
          %420 = sbr.rel (%p418) target = $region32
        $region31: #{tpu_custom_call.1} parent=11 // pred_region
          %s422 = ssub.s32 64, 64
          %423 = vsyncadd [#allocation15], %s422
          %s424 = sshll.u32 [#allocation14], 4
          %s425 = int_to_ptr.vmem [resolvable:$true] %s424
          %430 = dma.hbm_to_vmem [thread:$0]  %s7, 64, %s425, [#allocation15], 16, 16, 1
        $region32: #{tpu_custom_call.1} parent=11 // pred_fallthru
          _
        // Predicated region
        $region33: #{tpu_custom_call.1} parent=11 // pred_check
          %p431 = pneg %p253
        $region34: #{tpu_custom_call.1} parent=11 // pred_check_branch
          %433 = sbr.rel (%p431) target = $region36
        $region35: #{tpu_custom_call.1} parent=11 // pred_region
          %s435 = ssub.s32 64, 64
          %436 = vsyncadd [#allocation15], %s435
          %s437 = sshll.u32 [#allocation16], 4
          %s438 = int_to_ptr.vmem [resolvable:$true] %s437
          %443 = dma.hbm_to_vmem [thread:$0]  %s8, 64, %s438, [#allocation15], 16, 16, 1
        $region36: #{tpu_custom_call.1} parent=11 // pred_fallthru
          _
        // Predicated region
        $region37: #{tpu_custom_call.1} parent=11 // pred_check
          %p444 = pneg %p274
        $region38: #{tpu_custom_call.1} parent=11 // pred_check_branch
          %446 = sbr.rel (%p444) target = $region40
        $region39: #{tpu_custom_call.1} parent=11 // pred_region
          %s448 = ssub.s32 256, 256
          %449 = vsyncadd [#allocation18], %s448
          %s450 = sshll.u32 [#allocation17], 4
          %s451 = int_to_ptr.vmem [resolvable:$true] %s450
          %456 = dma.hbm_to_vmem [thread:$0]  %s9, 256, %s451, [#allocation18], 64, 64, 4
        $region40: #{tpu_custom_call.1} parent=11 // pred_fallthru
          _
        // Predicated region
        $region41: #{tpu_custom_call.1} parent=11 // pred_check
          %p457 = pneg %p295
        $region42: #{tpu_custom_call.1} parent=11 // pred_check_branch
          %459 = sbr.rel (%p457) target = $region44
        $region43: #{tpu_custom_call.1} parent=11 // pred_region
          %s461 = ssub.s32 16, 16
          %462 = vsyncadd [#allocation18], %s461
          %s464 = sshll.u32 [#allocation19], 4
          %s465 = int_to_ptr.vmem [resolvable:$true] %s464
          %467 = dma.hbm_to_vmem [thread:$0]  %s10, 16, %s465, [#allocation18]
        $region44: #{tpu_custom_call.1} parent=11 // pred_fallthru
          _
      $region12: #{tpu_custom_call.1} parent=5 // pred_fallthru
        _
      %p468 = scmp.lt.s32.totalorder %s35, 2
      // Predicated region
      $region45: #{tpu_custom_call.1} parent=5 // pred_check
        %p469 = pneg %p468
      $region46: #{tpu_custom_call.1} parent=5 // pred_check_branch
        %471 = sbr.rel (%p469) target = $region48
      $region47: #{tpu_custom_call.1} parent=5 // pred_region
        // Predicated region
        $region49: #{tpu_custom_call.1} parent=47 // pred_check
          %p472 = pneg %p69
        $region50: #{tpu_custom_call.1} parent=47 // pred_check_branch
          %474 = sbr.rel (%p472) target = $region52
        $region51: #{tpu_custom_call.1} parent=47 // pred_region
          %s475 = sand.u32 %s59, 1
          %s476 = scalar_lea.sflag [#allocation3], %s475
          %s477 = sand.u32 %s59, 1
          %s478 = smul.addr %s477, 4
          %s479 = scalar_lea.vmem [#allocation2], %s478
          %s481 = ssub.s32 64, 64
          %482 = vsyncadd %s476, %s481
          %s483 = sadd.s32 %s43, %s42
          %s484 = smul.addr %s483, 64
          %s485 = scalar_lea.hbm %s0, %s484
          %s487 = sshll.u32 %s479, 4
          %s488 = int_to_ptr.vmem [resolvable:$true] %s487
          %490 = dma.hbm_to_vmem [thread:$0]  %s485, 64, %s488, %s476
        $region52: #{tpu_custom_call.1} parent=47 // pred_fallthru
          _
        // Predicated region
        $region53: #{tpu_custom_call.1} parent=47 // pred_check
          %p491 = pneg %p95
        $region54: #{tpu_custom_call.1} parent=47 // pred_check_branch
          %493 = sbr.rel (%p491) target = $region56
        $region55: #{tpu_custom_call.1} parent=47 // pred_region
          %s494 = sand.u32 %s35, 1
          %s495 = scalar_lea.sflag [#allocation6], %s494
          %s496 = sand.u32 %s85, 1
          %s497 = smul.addr %s496, 4
          %s498 = scalar_lea.vmem [#allocation5], %s497
          %s500 = ssub.s32 64, 64
          %501 = vsyncadd %s495, %s500
          %s502 = smul.addr %s42, 64
          %s503 = scalar_lea.hbm %s1, %s502
          %s505 = sshll.u32 %s498, 4
          %s506 = int_to_ptr.vmem [resolvable:$true] %s505
          %508 = dma.hbm_to_vmem [thread:$0]  %s503, 64, %s506, %s495
        $region56: #{tpu_custom_call.1} parent=47 // pred_fallthru
          _
        // Predicated region
        $region57: #{tpu_custom_call.1} parent=47 // pred_check
          %p509 = pneg %p121
        $region58: #{tpu_custom_call.1} parent=47 // pred_check_branch
          %511 = sbr.rel (%p509) target = $region60
        $region59: #{tpu_custom_call.1} parent=47 // pred_region
          %s512 = sand.u32 %s35, 1
          %s513 = scalar_lea.sflag [#allocation6], %s512
          %s514 = sand.u32 %s111, 1
          %s515 = smul.addr %s514, 4
          %s516 = scalar_lea.vmem [#allocation7], %s515
          %s518 = ssub.s32 64, 64
          %519 = vsyncadd %s513, %s518
          %s520 = smul.addr %s42, 64
          %s521 = scalar_lea.hbm %s2, %s520
          %s523 = sshll.u32 %s516, 4
          %s524 = int_to_ptr.vmem [resolvable:$true] %s523
          %526 = dma.hbm_to_vmem [thread:$0]  %s521, 64, %s524, %s513
        $region60: #{tpu_custom_call.1} parent=47 // pred_fallthru
          _
      $region48: #{tpu_custom_call.1} parent=5 // pred_fallthru
        _
      %p527 = scmp.le.s32.totalorder 1, %s35
      %p528 = scmp.lt.s32.totalorder %s35, 3
      %p529 = pnand %p527, %p528
      %p530 = pneg %p529
      // Predicated region
      $region61: #{tpu_custom_call.1} parent=5 // pred_check
        _
      $region62: #{tpu_custom_call.1} parent=5 // pred_check_branch
        %532 = sbr.rel (%p529) target = $region64
      $region63: #{tpu_custom_call.1} parent=5 // pred_region
        %s533 = ssub.s32 %s35, 1
        %s534 = sand.u32 %s62, 1
        %s535 = scalar_lea.sflag [#allocation3], %s534
        %s536 = sand.u32 %s62, 1
        %s537 = smul.addr %s536, 4
        %s538 = scalar_lea.vmem [#allocation2], %s537
        // Predicated region
        $region65: #{tpu_custom_call.1} parent=63 // pred_check
          %p539 = pneg %p75
        $region66: #{tpu_custom_call.1} parent=63 // pred_check_branch
          %541 = sbr.rel (%p539) target = $region68
        $region67: #{tpu_custom_call.1} parent=63 // pred_region
          %542 = dma.done %s535, 64
        $region68: #{tpu_custom_call.1} parent=63 // pred_fallthru
          _
        %s543 = sand.u32 %s40, 1
        %s544 = scalar_lea.sflag [#allocation6], %s543
        %s545 = sand.u32 %s88, 1
        %s546 = smul.addr %s545, 4
        %s547 = scalar_lea.vmem [#allocation5], %s546
        // Predicated region
        $region69: #{tpu_custom_call.1} parent=63 // pred_check
          %p548 = pneg %p101
        $region70: #{tpu_custom_call.1} parent=63 // pred_check_branch
          %550 = sbr.rel (%p548) target = $region72
        $region71: #{tpu_custom_call.1} parent=63 // pred_region
          %551 = dma.done %s544, 64
        $region72: #{tpu_custom_call.1} parent=63 // pred_fallthru
          _
        %s552 = sand.u32 %s40, 1
        %s553 = scalar_lea.sflag [#allocation6], %s552
        %s554 = sand.u32 %s114, 1
        %s555 = smul.addr %s554, 4
        %s556 = scalar_lea.vmem [#allocation7], %s555
        // Predicated region
        $region73: #{tpu_custom_call.1} parent=63 // pred_check
          %p557 = pneg %p127
        $region74: #{tpu_custom_call.1} parent=63 // pred_check_branch
          %559 = sbr.rel (%p557) target = $region76
        $region75: #{tpu_custom_call.1} parent=63 // pred_region
          %560 = dma.done %s553, 64
        $region76: #{tpu_custom_call.1} parent=63 // pred_fallthru
          _
        // Predicated region
        $region77: #{tpu_custom_call.1} parent=63 // pred_check
          %p561 = pneg %p148
        $region78: #{tpu_custom_call.1} parent=63 // pred_check_branch
          %563 = sbr.rel (%p561) target = $region80
        $region79: #{tpu_custom_call.1} parent=63 // pred_region
          %564 = dma.done [#allocation9], 1024
        $region80: #{tpu_custom_call.1} parent=63 // pred_fallthru
          _
        // Predicated region
        $region81: #{tpu_custom_call.1} parent=63 // pred_check
          %p565 = pneg %p169
        $region82: #{tpu_custom_call.1} parent=63 // pred_check_branch
          %567 = sbr.rel (%p565) target = $region84
        $region83: #{tpu_custom_call.1} parent=63 // pred_region
          %568 = dma.done [#allocation9], 1024
        $region84: #{tpu_custom_call.1} parent=63 // pred_fallthru
          _
        // Predicated region
        $region85: #{tpu_custom_call.1} parent=63 // pred_check
          %p569 = pneg %p190
        $region86: #{tpu_custom_call.1} parent=63 // pred_check_branch
          %571 = sbr.rel (%p569) target = $region88
        $region87: #{tpu_custom_call.1} parent=63 // pred_region
          %572 = dma.done [#allocation12], 1024
        $region88: #{tpu_custom_call.1} parent=63 // pred_fallthru
          _
        // Predicated region
        $region89: #{tpu_custom_call.1} parent=63 // pred_check
          %p573 = pneg %p211
        $region90: #{tpu_custom_call.1} parent=63 // pred_check_branch
          %575 = sbr.rel (%p573) target = $region92
        $region91: #{tpu_custom_call.1} parent=63 // pred_region
          %576 = dma.done [#allocation12], 64
        $region92: #{tpu_custom_call.1} parent=63 // pred_fallthru
          _
        // Predicated region
        $region93: #{tpu_custom_call.1} parent=63 // pred_check
          %p577 = pneg %p232
        $region94: #{tpu_custom_call.1} parent=63 // pred_check_branch
          %579 = sbr.rel (%p577) target = $region96
        $region95: #{tpu_custom_call.1} parent=63 // pred_region
          %580 = dma.done [#allocation15], 64
        $region96: #{tpu_custom_call.1} parent=63 // pred_fallthru
          _
        // Predicated region
        $region97: #{tpu_custom_call.1} parent=63 // pred_check
          %p581 = pneg %p253
        $region98: #{tpu_custom_call.1} parent=63 // pred_check_branch
          %583 = sbr.rel (%p581) target = $region100
        $region99: #{tpu_custom_call.1} parent=63 // pred_region
          %584 = dma.done [#allocation15], 64
        $region100: #{tpu_custom_call.1} parent=63 // pred_fallthru
          _
        // Predicated region
        $region101: #{tpu_custom_call.1} parent=63 // pred_check
          %p585 = pneg %p274
        $region102: #{tpu_custom_call.1} parent=63 // pred_check_branch
          %587 = sbr.rel (%p585) target = $region104
        $region103: #{tpu_custom_call.1} parent=63 // pred_region
          %588 = dma.done [#allocation18], 256
        $region104: #{tpu_custom_call.1} parent=63 // pred_fallthru
          _
        // Predicated region
        $region105: #{tpu_custom_call.1} parent=63 // pred_check
          %p589 = pneg %p295
        $region106: #{tpu_custom_call.1} parent=63 // pred_check_branch
          %591 = sbr.rel (%p589) target = $region108
        $region107: #{tpu_custom_call.1} parent=63 // pred_region
          %592 = dma.done [#allocation18], 16
        $region108: #{tpu_custom_call.1} parent=63 // pred_fallthru
          _
        %s593 = sand.u32 %s62, 1
        %s594 = scalar_lea.sflag [#allocation3], %s593
        %s595 = sand.u32 %s62, 1
        %s596 = smul.addr %s595, 4
        %s597 = scalar_lea.vmem [#allocation2], %s596
        %p598 = pneg %p75
        %p599 = pneg %p72
        %s600 = sand.u32 %s40, 1
        %s601 = scalar_lea.sflag [#allocation6], %s600
        %s602 = sand.u32 %s88, 1
        %s603 = smul.addr %s602, 4
        %s604 = scalar_lea.vmem [#allocation5], %s603
        %p605 = pneg %p101
        %p606 = pneg %p98
        %s607 = sand.u32 %s40, 1
        %s608 = scalar_lea.sflag [#allocation6], %s607
        %s609 = sand.u32 %s114, 1
        %s610 = smul.addr %s609, 4
        %s611 = scalar_lea.vmem [#allocation7], %s610
        %p612 = pneg %p127
        %p613 = pneg %p124
        %p614 = pneg %p148
        %p615 = pneg %p145
        %p616 = pneg %p169
        %p617 = pneg %p166
        %p618 = pneg %p190
        %p619 = pneg %p187
        %p620 = pneg %p211
        %p621 = pneg %p208
        %p622 = pneg %p232
        %p623 = pneg %p229
        %p624 = pneg %p253
        %p625 = pneg %p250
        %p626 = pneg %p274
        %p627 = pneg %p271
        %p628 = pneg %p295
        %p629 = pneg %p292
        %p630 = pneg %p323
        %p631 = pneg %p320
        %s632 = sand.u32 %s310, 1
        %s633 = scalar_lea.sflag [#allocation4], %s632
        %s634 = sand.u32 %s310, 1
        %s635 = smul.addr %s634, 8
        %s636 = scalar_lea.vmem [#allocation20], %s635
        %p637 = pneg %p351
        %p638 = pneg %p348
        %s639 = sand.u32 %s338, 1
        %s640 = scalar_lea.sflag [#allocation22], %s639
        %s641 = sand.u32 %s338, 1
        %s642 = smul.addr %s641, 8
        %s643 = scalar_lea.vmem [#allocation21], %s642
        %v645 = vld [vmem:[%s538] sm:$0xf]
        %v646 = vld [vmem:[%s547] sm:$0xf]
        %v647 = vld [vmem:[%s556] sm:$0xf]
        %v648 = vld [vmem:[#allocation8] sm:$0xf]
        %v649 = vld [vmem:[#allocation8 + $0x4] sm:$0xf]
        %v650 = vld [vmem:[#allocation8 + $0x8] sm:$0xf]
        %v651 = vld [vmem:[#allocation8 + $0xc] sm:$0xf]
        %v652 = vld [vmem:[#allocation13] sm:$0x1]
        %v654 = vlaneseq
        %v655 = vshrl.u32 %v654, 7
        %v656 = vsub.s32 0, %v655
        %v657 = vrot.slane %v652, %v656
        %v663 = vunpack.c.l.b16 %v648
        %v664 = vunpack.c.l.b16 %v649
        %v665 = vunpack.c.l.b16 %v650
        %v666 = vunpack.c.l.b16 %v651
        %v667 = vpack.c.b16 %v664, %v663
        %v668 = vpack.c.b16 %v666, %v665
        %vm671 = vcmask 261120
        %v673 = vsel %vm671, %v645, 0
        %675 = vmatprep.subr.bf16.mxu0 0
        %676 = vmatpush1.bf16.msra.mxu0 %v667
        %677 = vmatprep.subr.bf16.mxu0 0
        %678 = vmatpush1.bf16.msra.mxu0 %v668
        %679 = vmatprep.subr.bf16.mxu0 0
        %680 = vmatpush1.bf16.msra.mxu0 0
        %681 = vmatprep.subr.bf16.mxu0 0
        %682 = vmatpush1.bf16.msra.mxu0 0
        %683 = vmatprep.subr.bf16.mxu0 0
        %684 = vmatpush1.bf16.msra.mxu0 0
        %685 = vmatprep.subr.bf16.mxu0 0
        %686 = vmatpush1.bf16.msra.mxu0 0
        %687 = vmatprep.subr.bf16.mxu0 0
        %688 = vmatpush1.bf16.msra.mxu0 0
        %689 = vmatprep.subr.bf16.mxu0 0
        %690 = vmatpush1.bf16.msra.mxu0 0
        %691 = vmatprep.subr.bf16.mxu0 0
        %692 = vmatpush1.bf16.msra.mxu0 0
        %693 = vmatprep.subr.bf16.mxu0 0
        %694 = vmatpush1.bf16.msra.mxu0 0
        %695 = vmatprep.subr.bf16.mxu0 0
        %696 = vmatpush1.bf16.msra.mxu0 0
        %697 = vmatprep.subr.bf16.mxu0 0
        %698 = vmatpush1.bf16.msra.mxu0 0
        %699 = vmatprep.subr.bf16.mxu0 0
        %700 = vmatpush1.bf16.msra.mxu0 0
        %701 = vmatprep.subr.bf16.mxu0 0
        %702 = vmatpush1.bf16.msra.mxu0 0
        %703 = vmatprep.subr.bf16.mxu0 0
        %704 = vmatpush1.bf16.msra.mxu0 0
        %705 = vmatprep.subr.bf16.mxu0 0
        %706 = vmatpush1.bf16.msra.mxu0 0
        %707 = vmatprep.mubr.bf16.mxu0 0
        %708 = vmatmul.mubr.bf16.gmra.mrb[0].mxu0 %v673
        %v709 = vpop.f32.mrb[0].mxu0
        %v710 = vadd.f32 %v657, %v709
        %v711 = vpop.f32.mrb[0].mxu0
        %v712 = vpop.f32.mrb[0].mxu0
        %v713 = vpop.f32.mrb[0].mxu0
        %714 = vdwg.mxu0
        %v715 = vld [vmem:[#allocation10] sm:$0xf]
        %v716 = vld [vmem:[#allocation10 + $0x4] sm:$0xf]
        %v717 = vld [vmem:[#allocation10 + $0x8] sm:$0xf]
        %v718 = vld [vmem:[#allocation10 + $0xc] sm:$0xf]
        %v719 = vld [vmem:[#allocation14] sm:$0x1]
        %v721 = vlaneseq
        %v722 = vshrl.u32 %v721, 7
        %v723 = vsub.s32 0, %v722
        %v724 = vrot.slane %v719, %v723
        %v730 = vunpack.c.l.b16 %v715
        %v731 = vunpack.c.l.b16 %v716
        %v732 = vunpack.c.l.b16 %v717
        %v733 = vunpack.c.l.b16 %v718
        %v734 = vpack.c.b16 %v731, %v730
        %v735 = vpack.c.b16 %v733, %v732
        %v739 = vsel %vm671, %v646, 0
        %741 = vmatprep.subr.bf16.mxu0 0
        %742 = vmatpush1.bf16.msra.mxu0 %v734
        %743 = vmatprep.subr.bf16.mxu0 0
        %744 = vmatpush1.bf16.msra.mxu0 %v735
        %745 = vmatprep.subr.bf16.mxu0 0
        %746 = vmatpush1.bf16.msra.mxu0 0
        %747 = vmatprep.subr.bf16.mxu0 0
        %748 = vmatpush1.bf16.msra.mxu0 0
        %749 = vmatprep.subr.bf16.mxu0 0
        %750 = vmatpush1.bf16.msra.mxu0 0
        %751 = vmatprep.subr.bf16.mxu0 0
        %752 = vmatpush1.bf16.msra.mxu0 0
        %753 = vmatprep.subr.bf16.mxu0 0
        %754 = vmatpush1.bf16.msra.mxu0 0
        %755 = vmatprep.subr.bf16.mxu0 0
        %756 = vmatpush1.bf16.msra.mxu0 0
        %757 = vmatprep.subr.bf16.mxu0 0
        %758 = vmatpush1.bf16.msra.mxu0 0
        %759 = vmatprep.subr.bf16.mxu0 0
        %760 = vmatpush1.bf16.msra.mxu0 0
        %761 = vmatprep.subr.bf16.mxu0 0
        %762 = vmatpush1.bf16.msra.mxu0 0
        %763 = vmatprep.subr.bf16.mxu0 0
        %764 = vmatpush1.bf16.msra.mxu0 0
        %765 = vmatprep.subr.bf16.mxu0 0
        %766 = vmatpush1.bf16.msra.mxu0 0
        %767 = vmatprep.subr.bf16.mxu0 0
        %768 = vmatpush1.bf16.msra.mxu0 0
        %769 = vmatprep.subr.bf16.mxu0 0
        %770 = vmatpush1.bf16.msra.mxu0 0
        %771 = vmatprep.subr.bf16.mxu0 0
        %772 = vmatpush1.bf16.msra.mxu0 0
        %773 = vmatprep.mubr.bf16.mxu0 0
        %774 = vmatmul.mubr.bf16.gmra.mrb[0].mxu0 %v739
        %v775 = vpop.f32.mrb[0].mxu0
        %v776 = vadd.f32 %v724, %v775
        %v777 = vpop.f32.mrb[0].mxu0
        %v778 = vpop.f32.mrb[0].mxu0
        %v779 = vpop.f32.mrb[0].mxu0
        %780 = vdwg.mxu0
        %v781 = vld [vmem:[#allocation11] sm:$0xf]
        %v782 = vld [vmem:[#allocation11 + $0x4] sm:$0xf]
        %v783 = vld [vmem:[#allocation11 + $0x8] sm:$0xf]
        %v784 = vld [vmem:[#allocation11 + $0xc] sm:$0xf]
        %v785 = vld [vmem:[#allocation16] sm:$0x1]
        %v787 = vlaneseq
        %v788 = vshrl.u32 %v787, 7
        %v789 = vsub.s32 0, %v788
        %v790 = vrot.slane %v785, %v789
        %v796 = vunpack.c.l.b16 %v781
        %v797 = vunpack.c.l.b16 %v782
        %v798 = vunpack.c.l.b16 %v783
        %v799 = vunpack.c.l.b16 %v784
        %v800 = vpack.c.b16 %v797, %v796
        %v801 = vpack.c.b16 %v799, %v798
        %v805 = vsel %vm671, %v647, 0
        %807 = vmatprep.subr.bf16.mxu0 0
        %808 = vmatpush1.bf16.msra.mxu0 %v800
        %809 = vmatprep.subr.bf16.mxu0 0
        %810 = vmatpush1.bf16.msra.mxu0 %v801
        %811 = vmatprep.subr.bf16.mxu0 0
        %812 = vmatpush1.bf16.msra.mxu0 0
        %813 = vmatprep.subr.bf16.mxu0 0
        %814 = vmatpush1.bf16.msra.mxu0 0
        %815 = vmatprep.subr.bf16.mxu0 0
        %816 = vmatpush1.bf16.msra.mxu0 0
        %817 = vmatprep.subr.bf16.mxu0 0
        %818 = vmatpush1.bf16.msra.mxu0 0
        %819 = vmatprep.subr.bf16.mxu0 0
        %820 = vmatpush1.bf16.msra.mxu0 0
        %821 = vmatprep.subr.bf16.mxu0 0
        %822 = vmatpush1.bf16.msra.mxu0 0
        %823 = vmatprep.subr.bf16.mxu0 0
        %824 = vmatpush1.bf16.msra.mxu0 0
        %825 = vmatprep.subr.bf16.mxu0 0
        %826 = vmatpush1.bf16.msra.mxu0 0
        %827 = vmatprep.subr.bf16.mxu0 0
        %828 = vmatpush1.bf16.msra.mxu0 0
        %829 = vmatprep.subr.bf16.mxu0 0
        %830 = vmatpush1.bf16.msra.mxu0 0
        %831 = vmatprep.subr.bf16.mxu0 0
        %832 = vmatpush1.bf16.msra.mxu0 0
        %833 = vmatprep.subr.bf16.mxu0 0
        %834 = vmatpush1.bf16.msra.mxu0 0
        %835 = vmatprep.subr.bf16.mxu0 0
        %836 = vmatpush1.bf16.msra.mxu0 0
        %837 = vmatprep.subr.bf16.mxu0 0
        %838 = vmatpush1.bf16.msra.mxu0 0
        %839 = vmatprep.mubr.bf16.mxu0 0
        %840 = vmatmul.mubr.bf16.gmra.mrb[0].mxu0 %v805
        %v841 = vpop.f32.mrb[0].mxu0
        %v842 = vadd.f32 %v790, %v841
        %v843 = vpop.f32.mrb[0].mxu0
        %v844 = vpop.f32.mrb[0].mxu0
        %v845 = vpop.f32.mrb[0].mxu0
        %846 = vdwg.mxu0
        %v847 = vmul.f32 %v710, 0.35355338
        %v848 = vpack.c.bf16 %v847, %v847
        %v849 = vpack.c.bf16 %v776, %v776
        %vm850 = vcmask 64512
        %v852 = vsel %vm850, %v848, 0
        %v855 = vsel %vm850, %v849, 0
        %857 = vmatprep.subr.bf16.mxu0 0
        %858 = vmatpush1.bf16.xpose.msra.mxu0 %v855
        %859 = vmatprep.subr.bf16.mxu0 0
        %860 = vmatpush1.bf16.xpose.msra.mxu0 0
        %861 = vmatprep.subr.bf16.mxu0 0
        %862 = vmatpush1.bf16.xpose.msra.mxu0 0
        %863 = vmatprep.subr.bf16.mxu0 0
        %864 = vmatpush1.bf16.xpose.msra.mxu0 0
        %865 = vmatprep.subr.bf16.mxu0 0
        %866 = vmatpush1.bf16.xpose.msra.mxu0 0
        %867 = vmatprep.subr.bf16.mxu0 0
        %868 = vmatpush1.bf16.xpose.msra.mxu0 0
        %869 = vmatprep.subr.bf16.mxu0 0
        %870 = vmatpush1.bf16.xpose.msra.mxu0 0
        %871 = vmatprep.subr.bf16.mxu0 0
        %872 = vmatpush1.bf16.xpose.msra.mxu0 0
        %873 = vmatprep.subr.bf16.mxu0 0
        %874 = vmatpush1.bf16.xpose.msra.mxu0 0
        %875 = vmatprep.subr.bf16.mxu0 0
        %876 = vmatpush1.bf16.xpose.msra.mxu0 0
        %877 = vmatprep.subr.bf16.mxu0 0
        %878 = vmatpush1.bf16.xpose.msra.mxu0 0
        %879 = vmatprep.subr.bf16.mxu0 0
        %880 = vmatpush1.bf16.xpose.msra.mxu0 0
        %881 = vmatprep.subr.bf16.mxu0 0
        %882 = vmatpush1.bf16.xpose.msra.mxu0 0
        %883 = vmatprep.subr.bf16.mxu0 0
        %884 = vmatpush1.bf16.xpose.msra.mxu0 0
        %885 = vmatprep.subr.bf16.mxu0 0
        %886 = vmatpush1.bf16.xpose.msra.mxu0 0
        %887 = vmatprep.subr.bf16.mxu0 0
        %888 = vmatpush1.bf16.xpose.msra.mxu0 0
        %889 = vmatprep.mubr.bf16.mxu0 0
        %890 = vmatmul.mubr.bf16.gmra.mrb[0].mxu0 %v852
        %v891 = vpop.f32.mrb[0].mxu0
        %v892 = vadd.f32 0.0, %v891
        %v893 = vpop.f32.mrb[0].mxu0
        %v894 = vpop.f32.mrb[0].mxu0
        %v895 = vpop.f32.mrb[0].mxu0
        %896 = vdwg.mxu0
        %v897 = vsel %vm850, %v892, -inf
        %898 = vmax.xlane.f32.xlu0 %v897
        %v899 = vpop.xlane.xlu0 %898
        %v900 = vsub.f32 %v892, %v899
        %v901 = vmul.f32 %v900, 1.442695
        %v902 = vpow.pop %v901
        %v903 = vsel %vm850, %v902, 0.0
        %904 = vadd.xlane.f32.xlu0 %v903
        %v905 = vpop.xlane.xlu0 %904
        %v906 = vrcp.pop %v905
        %v907 = vmul.f32 %v902, %v906
        %v908 = vadd.f32 %v907, 0.0
        %v909 = vpack.c.bf16 %v907, %v907
        %v910 = vpack.c.bf16 %v842, %v842
        %v912 = vsel %vm850, %v909, 0
        %vm914 = vcmask 1043456
        %v916 = vsel %vm914, %v910, 0
        %918 = vmatprep.subr.bf16.mxu0 0
        %919 = vmatpush1.bf16.msra.mxu0 %v916
        %920 = vmatprep.subr.bf16.mxu0 0
        %921 = vmatpush1.bf16.msra.mxu0 0
        %922 = vmatprep.subr.bf16.mxu0 0
        %923 = vmatpush1.bf16.msra.mxu0 0
        %924 = vmatprep.subr.bf16.mxu0 0
        %925 = vmatpush1.bf16.msra.mxu0 0
        %926 = vmatprep.subr.bf16.mxu0 0
        %927 = vmatpush1.bf16.msra.mxu0 0
        %928 = vmatprep.subr.bf16.mxu0 0
        %929 = vmatpush1.bf16.msra.mxu0 0
        %930 = vmatprep.subr.bf16.mxu0 0
        %931 = vmatpush1.bf16.msra.mxu0 0
        %932 = vmatprep.subr.bf16.mxu0 0
        %933 = vmatpush1.bf16.msra.mxu0 0
        %934 = vmatprep.subr.bf16.mxu0 0
        %935 = vmatpush1.bf16.msra.mxu0 0
        %936 = vmatprep.subr.bf16.mxu0 0
        %937 = vmatpush1.bf16.msra.mxu0 0
        %938 = vmatprep.subr.bf16.mxu0 0
        %939 = vmatpush1.bf16.msra.mxu0 0
        %940 = vmatprep.subr.bf16.mxu0 0
        %941 = vmatpush1.bf16.msra.mxu0 0
        %942 = vmatprep.subr.bf16.mxu0 0
        %943 = vmatpush1.bf16.msra.mxu0 0
        %944 = vmatprep.subr.bf16.mxu0 0
        %945 = vmatpush1.bf16.msra.mxu0 0
        %946 = vmatprep.subr.bf16.mxu0 0
        %947 = vmatpush1.bf16.msra.mxu0 0
        %948 = vmatprep.subr.bf16.mxu0 0
        %949 = vmatpush1.bf16.msra.mxu0 0
        %950 = vmatprep.mubr.bf16.mxu0 0
        %951 = vmatmul.mubr.bf16.gmra.mrb[0].mxu0 %v912
        %v952 = vpop.f32.mrb[0].mxu0
        %v953 = vadd.f32 0.0, %v952
        %v954 = vpop.f32.mrb[0].mxu0
        %v955 = vpop.f32.mrb[0].mxu0
        %v956 = vpop.f32.mrb[0].mxu0
        %957 = vdwg.mxu0
        %v958 = vpack.c.bf16 %v953, %v953
        %v959 = vld [vmem:[#allocation17] sm:$0xf]
        %s960 = scalar_lea.vmem [#allocation8], 16
        %v961 = vld [vmem:[%s960] sm:$0xf]
        %v962 = vld [vmem:[%s960 + $0x4] sm:$0xf]
        %v963 = vld [vmem:[%s960 + $0x8] sm:$0xf]
        %v964 = vld [vmem:[%s960 + $0xc] sm:$0xf]
        %s965 = scalar_lea.vmem [#allocation13], 1
        %v966 = vld [vmem:[%s965] sm:$0x1]
        %v968 = vlaneseq
        %v969 = vshrl.u32 %v968, 7
        %v970 = vsub.s32 0, %v969
        %v971 = vrot.slane %v966, %v970
        %v977 = vunpack.c.l.b16 %v961
        %v978 = vunpack.c.l.b16 %v962
        %v979 = vunpack.c.l.b16 %v963
        %v980 = vunpack.c.l.b16 %v964
        %v981 = vpack.c.b16 %v978, %v977
        %v982 = vpack.c.b16 %v980, %v979
        %985 = vmatprep.subr.bf16.mxu0 0
        %986 = vmatpush1.bf16.msra.mxu0 %v981
        %987 = vmatprep.subr.bf16.mxu0 0
        %988 = vmatpush1.bf16.msra.mxu0 %v982
        %989 = vmatprep.subr.bf16.mxu0 0
        %990 = vmatpush1.bf16.msra.mxu0 0
        %991 = vmatprep.subr.bf16.mxu0 0
        %992 = vmatpush1.bf16.msra.mxu0 0
        %993 = vmatprep.subr.bf16.mxu0 0
        %994 = vmatpush1.bf16.msra.mxu0 0
        %995 = vmatprep.subr.bf16.mxu0 0
        %996 = vmatpush1.bf16.msra.mxu0 0
        %997 = vmatprep.subr.bf16.mxu0 0
        %998 = vmatpush1.bf16.msra.mxu0 0
        %999 = vmatprep.subr.bf16.mxu0 0
        %1000 = vmatpush1.bf16.msra.mxu0 0
        %1001 = vmatprep.subr.bf16.mxu0 0
        %1002 = vmatpush1.bf16.msra.mxu0 0
        %1003 = vmatprep.subr.bf16.mxu0 0
        %1004 = vmatpush1.bf16.msra.mxu0 0
        %1005 = vmatprep.subr.bf16.mxu0 0
        %1006 = vmatpush1.bf16.msra.mxu0 0
        %1007 = vmatprep.subr.bf16.mxu0 0
        %1008 = vmatpush1.bf16.msra.mxu0 0
        %1009 = vmatprep.subr.bf16.mxu0 0
        %1010 = vmatpush1.bf16.msra.mxu0 0
        %1011 = vmatprep.subr.bf16.mxu0 0
        %1012 = vmatpush1.bf16.msra.mxu0 0
        %1013 = vmatprep.subr.bf16.mxu0 0
        %1014 = vmatpush1.bf16.msra.mxu0 0
        %1015 = vmatprep.subr.bf16.mxu0 0
        %1016 = vmatpush1.bf16.msra.mxu0 0
        %1017 = vmatprep.mubr.bf16.mxu0 0
        %1018 = vmatmul.mubr.bf16.gmra.mrb[0].mxu0 %v673
        %v1019 = vpop.f32.mrb[0].mxu0
        %v1020 = vadd.f32 %v971, %v1019
        %v1021 = vpop.f32.mrb[0].mxu0
        %v1022 = vpop.f32.mrb[0].mxu0
        %v1023 = vpop.f32.mrb[0].mxu0
        %1024 = vdwg.mxu0
        %s1025 = scalar_lea.vmem [#allocation10], 16
        %v1026 = vld [vmem:[%s1025] sm:$0xf]
        %v1027 = vld [vmem:[%s1025 + $0x4] sm:$0xf]
        %v1028 = vld [vmem:[%s1025 + $0x8] sm:$0xf]
        %v1029 = vld [vmem:[%s1025 + $0xc] sm:$0xf]
        %s1030 = scalar_lea.vmem [#allocation14], 1
        %v1031 = vld [vmem:[%s1030] sm:$0x1]
        %v1033 = vlaneseq
        %v1034 = vshrl.u32 %v1033, 7
        %v1035 = vsub.s32 0, %v1034
        %v1036 = vrot.slane %v1031, %v1035
        %v1042 = vunpack.c.l.b16 %v1026
        %v1043 = vunpack.c.l.b16 %v1027
        %v1044 = vunpack.c.l.b16 %v1028
        %v1045 = vunpack.c.l.b16 %v1029
        %v1046 = vpack.c.b16 %v1043, %v1042
        %v1047 = vpack.c.b16 %v1045, %v1044
        %1050 = vmatprep.subr.bf16.mxu0 0
        %1051 = vmatpush1.bf16.msra.mxu0 %v1046
        %1052 = vmatprep.subr.bf16.mxu0 0
        %1053 = vmatpush1.bf16.msra.mxu0 %v1047
        %1054 = vmatprep.subr.bf16.mxu0 0
        %1055 = vmatpush1.bf16.msra.mxu0 0
        %1056 = vmatprep.subr.bf16.mxu0 0
        %1057 = vmatpush1.bf16.msra.mxu0 0
        %1058 = vmatprep.subr.bf16.mxu0 0
        %1059 = vmatpush1.bf16.msra.mxu0 0
        %1060 = vmatprep.subr.bf16.mxu0 0
        %1061 = vmatpush1.bf16.msra.mxu0 0
        %1062 = vmatprep.subr.bf16.mxu0 0
        %1063 = vmatpush1.bf16.msra.mxu0 0
        %1064 = vmatprep.subr.bf16.mxu0 0
        %1065 = vmatpush1.bf16.msra.mxu0 0
        %1066 = vmatprep.subr.bf16.mxu0 0
        %1067 = vmatpush1.bf16.msra.mxu0 0
        %1068 = vmatprep.subr.bf16.mxu0 0
        %1069 = vmatpush1.bf16.msra.mxu0 0
        %1070 = vmatprep.subr.bf16.mxu0 0
        %1071 = vmatpush1.bf16.msra.mxu0 0
        %1072 = vmatprep.subr.bf16.mxu0 0
        %1073 = vmatpush1.bf16.msra.mxu0 0
        %1074 = vmatprep.subr.bf16.mxu0 0
        %1075 = vmatpush1.bf16.msra.mxu0 0
        %1076 = vmatprep.subr.bf16.mxu0 0
        %1077 = vmatpush1.bf16.msra.mxu0 0
        %1078 = vmatprep.subr.bf16.mxu0 0
        %1079 = vmatpush1.bf16.msra.mxu0 0
        %1080 = vmatprep.subr.bf16.mxu0 0
        %1081 = vmatpush1.bf16.msra.mxu0 0
        %1082 = vmatprep.mubr.bf16.mxu0 0
        %1083 = vmatmul.mubr.bf16.gmra.mrb[0].mxu0 %v739
        %v1084 = vpop.f32.mrb[0].mxu0
        %v1085 = vadd.f32 %v1036, %v1084
        %v1086 = vpop.f32.mrb[0].mxu0
        %v1087 = vpop.f32.mrb[0].mxu0
        %v1088 = vpop.f32.mrb[0].mxu0
        %1089 = vdwg.mxu0
        %s1090 = scalar_lea.vmem [#allocation11], 16
        %v1091 = vld [vmem:[%s1090] sm:$0xf]
        %v1092 = vld [vmem:[%s1090 + $0x4] sm:$0xf]
        %v1093 = vld [vmem:[%s1090 + $0x8] sm:$0xf]
        %v1094 = vld [vmem:[%s1090 + $0xc] sm:$0xf]
        %s1095 = scalar_lea.vmem [#allocation16], 1
        %v1096 = vld [vmem:[%s1095] sm:$0x1]
        %v1098 = vlaneseq
        %v1099 = vshrl.u32 %v1098, 7
        %v1100 = vsub.s32 0, %v1099
        %v1101 = vrot.slane %v1096, %v1100
        %v1107 = vunpack.c.l.b16 %v1091
        %v1108 = vunpack.c.l.b16 %v1092
        %v1109 = vunpack.c.l.b16 %v1093
        %v1110 = vunpack.c.l.b16 %v1094
        %v1111 = vpack.c.b16 %v1108, %v1107
        %v1112 = vpack.c.b16 %v1110, %v1109
        %1115 = vmatprep.subr.bf16.mxu0 0
        %1116 = vmatpush1.bf16.msra.mxu0 %v1111
        %1117 = vmatprep.subr.bf16.mxu0 0
        %1118 = vmatpush1.bf16.msra.mxu0 %v1112
        %1119 = vmatprep.subr.bf16.mxu0 0
        %1120 = vmatpush1.bf16.msra.mxu0 0
        %1121 = vmatprep.subr.bf16.mxu0 0
        %1122 = vmatpush1.bf16.msra.mxu0 0
        %1123 = vmatprep.subr.bf16.mxu0 0
        %1124 = vmatpush1.bf16.msra.mxu0 0
        %1125 = vmatprep.subr.bf16.mxu0 0
        %1126 = vmatpush1.bf16.msra.mxu0 0
        %1127 = vmatprep.subr.bf16.mxu0 0
        %1128 = vmatpush1.bf16.msra.mxu0 0
        %1129 = vmatprep.subr.bf16.mxu0 0
        %1130 = vmatpush1.bf16.msra.mxu0 0
        %1131 = vmatprep.subr.bf16.mxu0 0
        %1132 = vmatpush1.bf16.msra.mxu0 0
        %1133 = vmatprep.subr.bf16.mxu0 0
        %1134 = vmatpush1.bf16.msra.mxu0 0
        %1135 = vmatprep.subr.bf16.mxu0 0
        %1136 = vmatpush1.bf16.msra.mxu0 0
        %1137 = vmatprep.subr.bf16.mxu0 0
        %1138 = vmatpush1.bf16.msra.mxu0 0
        %1139 = vmatprep.subr.bf16.mxu0 0
        %1140 = vmatpush1.bf16.msra.mxu0 0
        %1141 = vmatprep.subr.bf16.mxu0 0
        %1142 = vmatpush1.bf16.msra.mxu0 0
        %1143 = vmatprep.subr.bf16.mxu0 0
        %1144 = vmatpush1.bf16.msra.mxu0 0
        %1145 = vmatprep.subr.bf16.mxu0 0
        %1146 = vmatpush1.bf16.msra.mxu0 0
        %1147 = vmatprep.mubr.bf16.mxu0 0
        %1148 = vmatmul.mubr.bf16.gmra.mrb[0].mxu0 %v805
        %v1149 = vpop.f32.mrb[0].mxu0
        %v1150 = vadd.f32 %v1101, %v1149
        %v1151 = vpop.f32.mrb[0].mxu0
        %v1152 = vpop.f32.mrb[0].mxu0
        %v1153 = vpop.f32.mrb[0].mxu0
        %1154 = vdwg.mxu0
        %v1155 = vmul.f32 %v1020, 0.35355338
        %v1156 = vpack.c.bf16 %v1155, %v1155
        %v1157 = vpack.c.bf16 %v1085, %v1085
        %v1159 = vsel %vm850, %v1156, 0
        %v1162 = vsel %vm850, %v1157, 0
        %1164 = vmatprep.subr.bf16.mxu0 0
        %1165 = vmatpush1.bf16.xpose.msra.mxu0 %v1162
        %1166 = vmatprep.subr.bf16.mxu0 0
        %1167 = vmatpush1.bf16.xpose.msra.mxu0 0
        %1168 = vmatprep.subr.bf16.mxu0 0
        %1169 = vmatpush1.bf16.xpose.msra.mxu0 0
        %1170 = vmatprep.subr.bf16.mxu0 0
        %1171 = vmatpush1.bf16.xpose.msra.mxu0 0
        %1172 = vmatprep.subr.bf16.mxu0 0
        %1173 = vmatpush1.bf16.xpose.msra.mxu0 0
        %1174 = vmatprep.subr.bf16.mxu0 0
        %1175 = vmatpush1.bf16.xpose.msra.mxu0 0
        %1176 = vmatprep.subr.bf16.mxu0 0
        %1177 = vmatpush1.bf16.xpose.msra.mxu0 0
        %1178 = vmatprep.subr.bf16.mxu0 0
        %1179 = vmatpush1.bf16.xpose.msra.mxu0 0
        %1180 = vmatprep.subr.bf16.mxu0 0
        %1181 = vmatpush1.bf16.xpose.msra.mxu0 0
        %1182 = vmatprep.subr.bf16.mxu0 0
        %1183 = vmatpush1.bf16.xpose.msra.mxu0 0
        %1184 = vmatprep.subr.bf16.mxu0 0
        %1185 = vmatpush1.bf16.xpose.msra.mxu0 0
        %1186 = vmatprep.subr.bf16.mxu0 0
        %1187 = vmatpush1.bf16.xpose.msra.mxu0 0
        %1188 = vmatprep.subr.bf16.mxu0 0
        %1189 = vmatpush1.bf16.xpose.msra.mxu0 0
        %1190 = vmatprep.subr.bf16.mxu0 0
        %1191 = vmatpush1.bf16.xpose.msra.mxu0 0
        %1192 = vmatprep.subr.bf16.mxu0 0
        %1193 = vmatpush1.bf16.xpose.msra.mxu0 0
        %1194 = vmatprep.subr.bf16.mxu0 0
        %1195 = vmatpush1.bf16.xpose.msra.mxu0 0
        %1196 = vmatprep.mubr.bf16.mxu0 0
        %1197 = vmatmul.mubr.bf16.gmra.mrb[0].mxu0 %v1159
        %v1198 = vpop.f32.mrb[0].mxu0
        %v1199 = vadd.f32 0.0, %v1198
        %v1200 = vpop.f32.mrb[0].mxu0
        %v1201 = vpop.f32.mrb[0].mxu0
        %v1202 = vpop.f32.mrb[0].mxu0
        %1203 = vdwg.mxu0
        %v1204 = vsel %vm850, %v1199, -inf
        %1205 = vmax.xlane.f32.xlu0 %v1204
        %v1206 = vpop.xlane.xlu0 %1205
        %v1207 = vsub.f32 %v1199, %v1206
        %v1208 = vmul.f32 %v1207, 1.442695
        %v1209 = vpow.pop %v1208
        %v1210 = vsel %vm850, %v1209, 0.0
        %1211 = vadd.xlane.f32.xlu0 %v1210
        %v1212 = vpop.xlane.xlu0 %1211
        %v1213 = vrcp.pop %v1212
        %v1214 = vmul.f32 %v1209, %v1213
        %v1215 = vadd.f32 %v908, %v1214
        %v1216 = vpack.c.bf16 %v1214, %v1214
        %v1217 = vpack.c.bf16 %v1150, %v1150
        %v1219 = vsel %vm850, %v1216, 0
        %v1222 = vsel %vm914, %v1217, 0
        %1224 = vmatprep.subr.bf16.mxu0 0
        %1225 = vmatpush1.bf16.msra.mxu0 %v1222
        %1226 = vmatprep.subr.bf16.mxu0 0
        %1227 = vmatpush1.bf16.msra.mxu0 0
        %1228 = vmatprep.subr.bf16.mxu0 0
        %1229 = vmatpush1.bf16.msra.mxu0 0
        %1230 = vmatprep.subr.bf16.mxu0 0
        %1231 = vmatpush1.bf16.msra.mxu0 0
        %1232 = vmatprep.subr.bf16.mxu0 0
        %1233 = vmatpush1.bf16.msra.mxu0 0
        %1234 = vmatprep.subr.bf16.mxu0 0
        %1235 = vmatpush1.bf16.msra.mxu0 0
        %1236 = vmatprep.subr.bf16.mxu0 0
        %1237 = vmatpush1.bf16.msra.mxu0 0
        %1238 = vmatprep.subr.bf16.mxu0 0
        %1239 = vmatpush1.bf16.msra.mxu0 0
        %1240 = vmatprep.subr.bf16.mxu0 0
        %1241 = vmatpush1.bf16.msra.mxu0 0
        %1242 = vmatprep.subr.bf16.mxu0 0
        %1243 = vmatpush1.bf16.msra.mxu0 0
        %1244 = vmatprep.subr.bf16.mxu0 0
        %1245 = vmatpush1.bf16.msra.mxu0 0
        %1246 = vmatprep.subr.bf16.mxu0 0
        %1247 = vmatpush1.bf16.msra.mxu0 0
        %1248 = vmatprep.subr.bf16.mxu0 0
        %1249 = vmatpush1.bf16.msra.mxu0 0
        %1250 = vmatprep.subr.bf16.mxu0 0
        %1251 = vmatpush1.bf16.msra.mxu0 0
        %1252 = vmatprep.subr.bf16.mxu0 0
        %1253 = vmatpush1.bf16.msra.mxu0 0
        %1254 = vmatprep.subr.bf16.mxu0 0
        %1255 = vmatpush1.bf16.msra.mxu0 0
        %1256 = vmatprep.mubr.bf16.mxu0 0
        %1257 = vmatmul.mubr.bf16.gmra.mrb[0].mxu0 %v1219
        %v1258 = vpop.f32.mrb[0].mxu0
        %v1259 = vadd.f32 0.0, %v1258
        %v1260 = vpop.f32.mrb[0].mxu0
        %v1261 = vpop.f32.mrb[0].mxu0
        %v1262 = vpop.f32.mrb[0].mxu0
        %1263 = vdwg.mxu0
        %v1264 = vpack.c.bf16 %v1259, %v1259
        %s1265 = scalar_lea.vmem [#allocation17], 4
        %v1266 = vld [vmem:[%s1265] sm:$0xf]
        %v1268 = vsel %vm850, %v1264, 0
        %v1271 = vsel %vm914, %v1266, 0
        %1273 = vmatprep.subr.bf16.mxu0 0
        %1274 = vmatpush1.bf16.msra.mxu0 %v1271
        %1275 = vmatprep.subr.bf16.mxu0 0
        %1276 = vmatpush1.bf16.msra.mxu0 0
        %1277 = vmatprep.subr.bf16.mxu0 0
        %1278 = vmatpush1.bf16.msra.mxu0 0
        %1279 = vmatprep.subr.bf16.mxu0 0
        %1280 = vmatpush1.bf16.msra.mxu0 0
        %1281 = vmatprep.subr.bf16.mxu0 0
        %1282 = vmatpush1.bf16.msra.mxu0 0
        %1283 = vmatprep.subr.bf16.mxu0 0
        %1284 = vmatpush1.bf16.msra.mxu0 0
        %1285 = vmatprep.subr.bf16.mxu0 0
        %1286 = vmatpush1.bf16.msra.mxu0 0
        %1287 = vmatprep.subr.bf16.mxu0 0
        %1288 = vmatpush1.bf16.msra.mxu0 0
        %1289 = vmatprep.subr.bf16.mxu0 0
        %1290 = vmatpush1.bf16.msra.mxu0 0
        %1291 = vmatprep.subr.bf16.mxu0 0
        %1292 = vmatpush1.bf16.msra.mxu0 0
        %1293 = vmatprep.subr.bf16.mxu0 0
        %1294 = vmatpush1.bf16.msra.mxu0 0
        %1295 = vmatprep.subr.bf16.mxu0 0
        %1296 = vmatpush1.bf16.msra.mxu0 0
        %1297 = vmatprep.subr.bf16.mxu0 0
        %1298 = vmatpush1.bf16.msra.mxu0 0
        %1299 = vmatprep.subr.bf16.mxu0 0
        %1300 = vmatpush1.bf16.msra.mxu0 0
        %1301 = vmatprep.subr.bf16.mxu0 0
        %1302 = vmatpush1.bf16.msra.mxu0 0
        %1303 = vmatprep.subr.bf16.mxu0 0
        %1304 = vmatpush1.bf16.msra.mxu0 0
        %1305 = vmatprep.mubr.bf16.mxu0 0
        %1306 = vmatmul.mubr.bf16.gmra.mrb[0].mxu0 %v1268
        %v1307 = vpop.f32.mrb[0].mxu0
        %v1308 = vadd.f32 0.0, %v1307
        %v1309 = vpop.f32.mrb[0].mxu0
        %v1310 = vpop.f32.mrb[0].mxu0
        %v1311 = vpop.f32.mrb[0].mxu0
        %1312 = vdwg.mxu0
        %v1314 = vsel %vm850, %v958, 0
        %v1317 = vsel %vm914, %v959, 0
        %1319 = vmatprep.subr.bf16.mxu0 0
        %1320 = vmatpush1.bf16.msra.mxu0 %v1317
        %1321 = vmatprep.subr.bf16.mxu0 0
        %1322 = vmatpush1.bf16.msra.mxu0 0
        %1323 = vmatprep.subr.bf16.mxu0 0
        %1324 = vmatpush1.bf16.msra.mxu0 0
        %1325 = vmatprep.subr.bf16.mxu0 0
        %1326 = vmatpush1.bf16.msra.mxu0 0
        %1327 = vmatprep.subr.bf16.mxu0 0
        %1328 = vmatpush1.bf16.msra.mxu0 0
        %1329 = vmatprep.subr.bf16.mxu0 0
        %1330 = vmatpush1.bf16.msra.mxu0 0
        %1331 = vmatprep.subr.bf16.mxu0 0
        %1332 = vmatpush1.bf16.msra.mxu0 0
        %1333 = vmatprep.subr.bf16.mxu0 0
        %1334 = vmatpush1.bf16.msra.mxu0 0
        %1335 = vmatprep.subr.bf16.mxu0 0
        %1336 = vmatpush1.bf16.msra.mxu0 0
        %1337 = vmatprep.subr.bf16.mxu0 0
        %1338 = vmatpush1.bf16.msra.mxu0 0
        %1339 = vmatprep.subr.bf16.mxu0 0
        %1340 = vmatpush1.bf16.msra.mxu0 0
        %1341 = vmatprep.subr.bf16.mxu0 0
        %1342 = vmatpush1.bf16.msra.mxu0 0
        %1343 = vmatprep.subr.bf16.mxu0 0
        %1344 = vmatpush1.bf16.msra.mxu0 0
        %1345 = vmatprep.subr.bf16.mxu0 0
        %1346 = vmatpush1.bf16.msra.mxu0 0
        %1347 = vmatprep.subr.bf16.mxu0 0
        %1348 = vmatpush1.bf16.msra.mxu0 0
        %1349 = vmatprep.subr.bf16.mxu0 0
        %1350 = vmatpush1.bf16.msra.mxu0 0
        %1351 = vmatprep.mubr.bf16.mxu0 0
        %1352 = vmatmul.mubr.bf16.gmra.mrb[0].mxu0 %v1314
        %v1353 = vpop.f32.mrb[0].mxu0
        %v1354 = vadd.f32 %v1308, %v1353
        %v1355 = vpop.f32.mrb[0].mxu0
        %v1356 = vpop.f32.mrb[0].mxu0
        %v1357 = vpop.f32.mrb[0].mxu0
        %1358 = vdwg.mxu0
        %s1359 = scalar_lea.vmem [#allocation8], 32
        %v1360 = vld [vmem:[%s1359] sm:$0xf]
        %v1361 = vld [vmem:[%s1359 + $0x4] sm:$0xf]
        %v1362 = vld [vmem:[%s1359 + $0x8] sm:$0xf]
        %v1363 = vld [vmem:[%s1359 + $0xc] sm:$0xf]
        %s1364 = scalar_lea.vmem [#allocation13], 2
        %v1365 = vld [vmem:[%s1364] sm:$0x1]
        %v1367 = vlaneseq
        %v1368 = vshrl.u32 %v1367, 7
        %v1369 = vsub.s32 0, %v1368
        %v1370 = vrot.slane %v1365, %v1369
        %v1376 = vunpack.c.l.b16 %v1360
        %v1377 = vunpack.c.l.b16 %v1361
        %v1378 = vunpack.c.l.b16 %v1362
        %v1379 = vunpack.c.l.b16 %v1363
        %v1380 = vpack.c.b16 %v1377, %v1376
        %v1381 = vpack.c.b16 %v1379, %v1378
        %1384 = vmatprep.subr.bf16.mxu0 0
        %1385 = vmatpush1.bf16.msra.mxu0 %v1380
        %1386 = vmatprep.subr.bf16.mxu0 0
        %1387 = vmatpush1.bf16.msra.mxu0 %v1381
        %1388 = vmatprep.subr.bf16.mxu0 0
        %1389 = vmatpush1.bf16.msra.mxu0 0
        %1390 = vmatprep.subr.bf16.mxu0 0
        %1391 = vmatpush1.bf16.msra.mxu0 0
        %1392 = vmatprep.subr.bf16.mxu0 0
        %1393 = vmatpush1.bf16.msra.mxu0 0
        %1394 = vmatprep.subr.bf16.mxu0 0
        %1395 = vmatpush1.bf16.msra.mxu0 0
        %1396 = vmatprep.subr.bf16.mxu0 0
        %1397 = vmatpush1.bf16.msra.mxu0 0
        %1398 = vmatprep.subr.bf16.mxu0 0
        %1399 = vmatpush1.bf16.msra.mxu0 0
        %1400 = vmatprep.subr.bf16.mxu0 0
        %1401 = vmatpush1.bf16.msra.mxu0 0
        %1402 = vmatprep.subr.bf16.mxu0 0
        %1403 = vmatpush1.bf16.msra.mxu0 0
        %1404 = vmatprep.subr.bf16.mxu0 0
        %1405 = vmatpush1.bf16.msra.mxu0 0
        %1406 = vmatprep.subr.bf16.mxu0 0
        %1407 = vmatpush1.bf16.msra.mxu0 0
        %1408 = vmatprep.subr.bf16.mxu0 0
        %1409 = vmatpush1.bf16.msra.mxu0 0
        %1410 = vmatprep.subr.bf16.mxu0 0
        %1411 = vmatpush1.bf16.msra.mxu0 0
        %1412 = vmatprep.subr.bf16.mxu0 0
        %1413 = vmatpush1.bf16.msra.mxu0 0
        %1414 = vmatprep.subr.bf16.mxu0 0
        %1415 = vmatpush1.bf16.msra.mxu0 0
        %1416 = vmatprep.mubr.bf16.mxu0 0
        %1417 = vmatmul.mubr.bf16.gmra.mrb[0].mxu0 %v673
        %v1418 = vpop.f32.mrb[0].mxu0
        %v1419 = vadd.f32 %v1370, %v1418
        %v1420 = vpop.f32.mrb[0].mxu0
        %v1421 = vpop.f32.mrb[0].mxu0
        %v1422 = vpop.f32.mrb[0].mxu0
        %1423 = vdwg.mxu0
        %s1424 = scalar_lea.vmem [#allocation10], 32
        %v1425 = vld [vmem:[%s1424] sm:$0xf]
        %v1426 = vld [vmem:[%s1424 + $0x4] sm:$0xf]
        %v1427 = vld [vmem:[%s1424 + $0x8] sm:$0xf]
        %v1428 = vld [vmem:[%s1424 + $0xc] sm:$0xf]
        %s1429 = scalar_lea.vmem [#allocation14], 2
        %v1430 = vld [vmem:[%s1429] sm:$0x1]
        %v1432 = vlaneseq
        %v1433 = vshrl.u32 %v1432, 7
        %v1434 = vsub.s32 0, %v1433
        %v1435 = vrot.slane %v1430, %v1434
        %v1441 = vunpack.c.l.b16 %v1425
        %v1442 = vunpack.c.l.b16 %v1426
        %v1443 = vunpack.c.l.b16 %v1427
        %v1444 = vunpack.c.l.b16 %v1428
        %v1445 = vpack.c.b16 %v1442, %v1441
        %v1446 = vpack.c.b16 %v1444, %v1443
        %1449 = vmatprep.subr.bf16.mxu0 0
        %1450 = vmatpush1.bf16.msra.mxu0 %v1445
        %1451 = vmatprep.subr.bf16.mxu0 0
        %1452 = vmatpush1.bf16.msra.mxu0 %v1446
        %1453 = vmatprep.subr.bf16.mxu0 0
        %1454 = vmatpush1.bf16.msra.mxu0 0
        %1455 = vmatprep.subr.bf16.mxu0 0
        %1456 = vmatpush1.bf16.msra.mxu0 0
        %1457 = vmatprep.subr.bf16.mxu0 0
        %1458 = vmatpush1.bf16.msra.mxu0 0
        %1459 = vmatprep.subr.bf16.mxu0 0
        %1460 = vmatpush1.bf16.msra.mxu0 0
        %1461 = vmatprep.subr.bf16.mxu0 0
        %1462 = vmatpush1.bf16.msra.mxu0 0
        %1463 = vmatprep.subr.bf16.mxu0 0
        %1464 = vmatpush1.bf16.msra.mxu0 0
        %1465 = vmatprep.subr.bf16.mxu0 0
        %1466 = vmatpush1.bf16.msra.mxu0 0
        %1467 = vmatprep.subr.bf16.mxu0 0
        %1468 = vmatpush1.bf16.msra.mxu0 0
        %1469 = vmatprep.subr.bf16.mxu0 0
        %1470 = vmatpush1.bf16.msra.mxu0 0
        %1471 = vmatprep.subr.bf16.mxu0 0
        %1472 = vmatpush1.bf16.msra.mxu0 0
        %1473 = vmatprep.subr.bf16.mxu0 0
        %1474 = vmatpush1.bf16.msra.mxu0 0
        %1475 = vmatprep.subr.bf16.mxu0 0
        %1476 = vmatpush1.bf16.msra.mxu0 0
        %1477 = vmatprep.subr.bf16.mxu0 0
        %1478 = vmatpush1.bf16.msra.mxu0 0
        %1479 = vmatprep.subr.bf16.mxu0 0
        %1480 = vmatpush1.bf16.msra.mxu0 0
        %1481 = vmatprep.mubr.bf16.mxu0 0
        %1482 = vmatmul.mubr.bf16.gmra.mrb[0].mxu0 %v739
        %v1483 = vpop.f32.mrb[0].mxu0
        %v1484 = vadd.f32 %v1435, %v1483
        %v1485 = vpop.f32.mrb[0].mxu0
        %v1486 = vpop.f32.mrb[0].mxu0
        %v1487 = vpop.f32.mrb[0].mxu0
        %1488 = vdwg.mxu0
        %s1489 = scalar_lea.vmem [#allocation11], 32
        %v1490 = vld [vmem:[%s1489] sm:$0xf]
        %v1491 = vld [vmem:[%s1489 + $0x4] sm:$0xf]
        %v1492 = vld [vmem:[%s1489 + $0x8] sm:$0xf]
        %v1493 = vld [vmem:[%s1489 + $0xc] sm:$0xf]
        %s1494 = scalar_lea.vmem [#allocation16], 2
        %v1495 = vld [vmem:[%s1494] sm:$0x1]
        %v1497 = vlaneseq
        %v1498 = vshrl.u32 %v1497, 7
        %v1499 = vsub.s32 0, %v1498
        %v1500 = vrot.slane %v1495, %v1499
        %v1506 = vunpack.c.l.b16 %v1490
        %v1507 = vunpack.c.l.b16 %v1491
        %v1508 = vunpack.c.l.b16 %v1492
        %v1509 = vunpack.c.l.b16 %v1493
        %v1510 = vpack.c.b16 %v1507, %v1506
        %v1511 = vpack.c.b16 %v1509, %v1508
        %1514 = vmatprep.subr.bf16.mxu0 0
        %1515 = vmatpush1.bf16.msra.mxu0 %v1510
        %1516 = vmatprep.subr.bf16.mxu0 0
        %1517 = vmatpush1.bf16.msra.mxu0 %v1511
        %1518 = vmatprep.subr.bf16.mxu0 0
        %1519 = vmatpush1.bf16.msra.mxu0 0
        %1520 = vmatprep.subr.bf16.mxu0 0
        %1521 = vmatpush1.bf16.msra.mxu0 0
        %1522 = vmatprep.subr.bf16.mxu0 0
        %1523 = vmatpush1.bf16.msra.mxu0 0
        %1524 = vmatprep.subr.bf16.mxu0 0
        %1525 = vmatpush1.bf16.msra.mxu0 0
        %1526 = vmatprep.subr.bf16.mxu0 0
        %1527 = vmatpush1.bf16.msra.mxu0 0
        %1528 = vmatprep.subr.bf16.mxu0 0
        %1529 = vmatpush1.bf16.msra.mxu0 0
        %1530 = vmatprep.subr.bf16.mxu0 0
        %1531 = vmatpush1.bf16.msra.mxu0 0
        %1532 = vmatprep.subr.bf16.mxu0 0
        %1533 = vmatpush1.bf16.msra.mxu0 0
        %1534 = vmatprep.subr.bf16.mxu0 0
        %1535 = vmatpush1.bf16.msra.mxu0 0
        %1536 = vmatprep.subr.bf16.mxu0 0
        %1537 = vmatpush1.bf16.msra.mxu0 0
        %1538 = vmatprep.subr.bf16.mxu0 0
        %1539 = vmatpush1.bf16.msra.mxu0 0
        %1540 = vmatprep.subr.bf16.mxu0 0
        %1541 = vmatpush1.bf16.msra.mxu0 0
        %1542 = vmatprep.subr.bf16.mxu0 0
        %1543 = vmatpush1.bf16.msra.mxu0 0
        %1544 = vmatprep.subr.bf16.mxu0 0
        %1545 = vmatpush1.bf16.msra.mxu0 0
        %1546 = vmatprep.mubr.bf16.mxu0 0
        %1547 = vmatmul.mubr.bf16.gmra.mrb[0].mxu0 %v805
        %v1548 = vpop.f32.mrb[0].mxu0
        %v1549 = vadd.f32 %v1500, %v1548
        %v1550 = vpop.f32.mrb[0].mxu0
        %v1551 = vpop.f32.mrb[0].mxu0
        %v1552 = vpop.f32.mrb[0].mxu0
        %1553 = vdwg.mxu0
        %v1554 = vmul.f32 %v1419, 0.35355338
        %v1555 = vpack.c.bf16 %v1554, %v1554
        %v1556 = vpack.c.bf16 %v1484, %v1484
        %v1558 = vsel %vm850, %v1555, 0
        %v1561 = vsel %vm850, %v1556, 0
        %1563 = vmatprep.subr.bf16.mxu0 0
        %1564 = vmatpush1.bf16.xpose.msra.mxu0 %v1561
        %1565 = vmatprep.subr.bf16.mxu0 0
        %1566 = vmatpush1.bf16.xpose.msra.mxu0 0
        %1567 = vmatprep.subr.bf16.mxu0 0
        %1568 = vmatpush1.bf16.xpose.msra.mxu0 0
        %1569 = vmatprep.subr.bf16.mxu0 0
        %1570 = vmatpush1.bf16.xpose.msra.mxu0 0
        %1571 = vmatprep.subr.bf16.mxu0 0
        %1572 = vmatpush1.bf16.xpose.msra.mxu0 0
        %1573 = vmatprep.subr.bf16.mxu0 0
        %1574 = vmatpush1.bf16.xpose.msra.mxu0 0
        %1575 = vmatprep.subr.bf16.mxu0 0
        %1576 = vmatpush1.bf16.xpose.msra.mxu0 0
        %1577 = vmatprep.subr.bf16.mxu0 0
        %1578 = vmatpush1.bf16.xpose.msra.mxu0 0
        %1579 = vmatprep.subr.bf16.mxu0 0
        %1580 = vmatpush1.bf16.xpose.msra.mxu0 0
        %1581 = vmatprep.subr.bf16.mxu0 0
        %1582 = vmatpush1.bf16.xpose.msra.mxu0 0
        %1583 = vmatprep.subr.bf16.mxu0 0
        %1584 = vmatpush1.bf16.xpose.msra.mxu0 0
        %1585 = vmatprep.subr.bf16.mxu0 0
        %1586 = vmatpush1.bf16.xpose.msra.mxu0 0
        %1587 = vmatprep.subr.bf16.mxu0 0
        %1588 = vmatpush1.bf16.xpose.msra.mxu0 0
        %1589 = vmatprep.subr.bf16.mxu0 0
        %1590 = vmatpush1.bf16.xpose.msra.mxu0 0
        %1591 = vmatprep.subr.bf16.mxu0 0
        %1592 = vmatpush1.bf16.xpose.msra.mxu0 0
        %1593 = vmatprep.subr.bf16.mxu0 0
        %1594 = vmatpush1.bf16.xpose.msra.mxu0 0
        %1595 = vmatprep.mubr.bf16.mxu0 0
        %1596 = vmatmul.mubr.bf16.gmra.mrb[0].mxu0 %v1558
        %v1597 = vpop.f32.mrb[0].mxu0
        %v1598 = vadd.f32 0.0, %v1597
        %v1599 = vpop.f32.mrb[0].mxu0
        %v1600 = vpop.f32.mrb[0].mxu0
        %v1601 = vpop.f32.mrb[0].mxu0
        %1602 = vdwg.mxu0
        %v1603 = vsel %vm850, %v1598, -inf
        %1604 = vmax.xlane.f32.xlu0 %v1603
        %v1605 = vpop.xlane.xlu0 %1604
        %v1606 = vsub.f32 %v1598, %v1605
        %v1607 = vmul.f32 %v1606, 1.442695
        %v1608 = vpow.pop %v1607
        %v1609 = vsel %vm850, %v1608, 0.0
        %1610 = vadd.xlane.f32.xlu0 %v1609
        %v1611 = vpop.xlane.xlu0 %1610
        %v1612 = vrcp.pop %v1611
        %v1613 = vmul.f32 %v1608, %v1612
        %v1614 = vadd.f32 %v1215, %v1613
        %v1615 = vpack.c.bf16 %v1613, %v1613
        %v1616 = vpack.c.bf16 %v1549, %v1549
        %v1618 = vsel %vm850, %v1615, 0
        %v1621 = vsel %vm914, %v1616, 0
        %1623 = vmatprep.subr.bf16.mxu0 0
        %1624 = vmatpush1.bf16.msra.mxu0 %v1621
        %1625 = vmatprep.subr.bf16.mxu0 0
        %1626 = vmatpush1.bf16.msra.mxu0 0
        %1627 = vmatprep.subr.bf16.mxu0 0
        %1628 = vmatpush1.bf16.msra.mxu0 0
        %1629 = vmatprep.subr.bf16.mxu0 0
        %1630 = vmatpush1.bf16.msra.mxu0 0
        %1631 = vmatprep.subr.bf16.mxu0 0
        %1632 = vmatpush1.bf16.msra.mxu0 0
        %1633 = vmatprep.subr.bf16.mxu0 0
        %1634 = vmatpush1.bf16.msra.mxu0 0
        %1635 = vmatprep.subr.bf16.mxu0 0
        %1636 = vmatpush1.bf16.msra.mxu0 0
        %1637 = vmatprep.subr.bf16.mxu0 0
        %1638 = vmatpush1.bf16.msra.mxu0 0
        %1639 = vmatprep.subr.bf16.mxu0 0
        %1640 = vmatpush1.bf16.msra.mxu0 0
        %1641 = vmatprep.subr.bf16.mxu0 0
        %1642 = vmatpush1.bf16.msra.mxu0 0
        %1643 = vmatprep.subr.bf16.mxu0 0
        %1644 = vmatpush1.bf16.msra.mxu0 0
        %1645 = vmatprep.subr.bf16.mxu0 0
        %1646 = vmatpush1.bf16.msra.mxu0 0
        %1647 = vmatprep.subr.bf16.mxu0 0
        %1648 = vmatpush1.bf16.msra.mxu0 0
        %1649 = vmatprep.subr.bf16.mxu0 0
        %1650 = vmatpush1.bf16.msra.mxu0 0
        %1651 = vmatprep.subr.bf16.mxu0 0
        %1652 = vmatpush1.bf16.msra.mxu0 0
        %1653 = vmatprep.subr.bf16.mxu0 0
        %1654 = vmatpush1.bf16.msra.mxu0 0
        %1655 = vmatprep.mubr.bf16.mxu0 0
        %1656 = vmatmul.mubr.bf16.gmra.mrb[0].mxu0 %v1618
        %v1657 = vpop.f32.mrb[0].mxu0
        %v1658 = vadd.f32 0.0, %v1657
        %v1659 = vpop.f32.mrb[0].mxu0
        %v1660 = vpop.f32.mrb[0].mxu0
        %v1661 = vpop.f32.mrb[0].mxu0
        %1662 = vdwg.mxu0
        %v1663 = vpack.c.bf16 %v1658, %v1658
        %s1664 = scalar_lea.vmem [#allocation17], 8
        %v1665 = vld [vmem:[%s1664] sm:$0xf]
        %v1667 = vsel %vm850, %v1663, 0
        %v1670 = vsel %vm914, %v1665, 0
        %1672 = vmatprep.subr.bf16.mxu0 0
        %1673 = vmatpush1.bf16.msra.mxu0 %v1670
        %1674 = vmatprep.subr.bf16.mxu0 0
        %1675 = vmatpush1.bf16.msra.mxu0 0
        %1676 = vmatprep.subr.bf16.mxu0 0
        %1677 = vmatpush1.bf16.msra.mxu0 0
        %1678 = vmatprep.subr.bf16.mxu0 0
        %1679 = vmatpush1.bf16.msra.mxu0 0
        %1680 = vmatprep.subr.bf16.mxu0 0
        %1681 = vmatpush1.bf16.msra.mxu0 0
        %1682 = vmatprep.subr.bf16.mxu0 0
        %1683 = vmatpush1.bf16.msra.mxu0 0
        %1684 = vmatprep.subr.bf16.mxu0 0
        %1685 = vmatpush1.bf16.msra.mxu0 0
        %1686 = vmatprep.subr.bf16.mxu0 0
        %1687 = vmatpush1.bf16.msra.mxu0 0
        %1688 = vmatprep.subr.bf16.mxu0 0
        %1689 = vmatpush1.bf16.msra.mxu0 0
        %1690 = vmatprep.subr.bf16.mxu0 0
        %1691 = vmatpush1.bf16.msra.mxu0 0
        %1692 = vmatprep.subr.bf16.mxu0 0
        %1693 = vmatpush1.bf16.msra.mxu0 0
        %1694 = vmatprep.subr.bf16.mxu0 0
        %1695 = vmatpush1.bf16.msra.mxu0 0
        %1696 = vmatprep.subr.bf16.mxu0 0
        %1697 = vmatpush1.bf16.msra.mxu0 0
        %1698 = vmatprep.subr.bf16.mxu0 0
        %1699 = vmatpush1.bf16.msra.mxu0 0
        %1700 = vmatprep.subr.bf16.mxu0 0
        %1701 = vmatpush1.bf16.msra.mxu0 0
        %1702 = vmatprep.subr.bf16.mxu0 0
        %1703 = vmatpush1.bf16.msra.mxu0 0
        %1704 = vmatprep.mubr.bf16.mxu0 0
        %1705 = vmatmul.mubr.bf16.gmra.mrb[0].mxu0 %v1667
        %v1706 = vpop.f32.mrb[0].mxu0
        %v1707 = vadd.f32 0.0, %v1706
        %v1708 = vpop.f32.mrb[0].mxu0
        %v1709 = vpop.f32.mrb[0].mxu0
        %v1710 = vpop.f32.mrb[0].mxu0
        %1711 = vdwg.mxu0
        %v1712 = vadd.f32 %v1354, %v1707
        %s1713 = scalar_lea.vmem [#allocation8], 48
        %v1714 = vld [vmem:[%s1713] sm:$0xf]
        %v1715 = vld [vmem:[%s1713 + $0x4] sm:$0xf]
        %v1716 = vld [vmem:[%s1713 + $0x8] sm:$0xf]
        %v1717 = vld [vmem:[%s1713 + $0xc] sm:$0xf]
        %s1718 = scalar_lea.vmem [#allocation13], 3
        %v1719 = vld [vmem:[%s1718] sm:$0x1]
        %v1721 = vlaneseq
        %v1722 = vshrl.u32 %v1721, 7
        %v1723 = vsub.s32 0, %v1722
        %v1724 = vrot.slane %v1719, %v1723
        %v1730 = vunpack.c.l.b16 %v1714
        %v1731 = vunpack.c.l.b16 %v1715
        %v1732 = vunpack.c.l.b16 %v1716
        %v1733 = vunpack.c.l.b16 %v1717
        %v1734 = vpack.c.b16 %v1731, %v1730
        %v1735 = vpack.c.b16 %v1733, %v1732
        %1738 = vmatprep.subr.bf16.mxu0 0
        %1739 = vmatpush1.bf16.msra.mxu0 %v1734
        %1740 = vmatprep.subr.bf16.mxu0 0
        %1741 = vmatpush1.bf16.msra.mxu0 %v1735
        %1742 = vmatprep.subr.bf16.mxu0 0
        %1743 = vmatpush1.bf16.msra.mxu0 0
        %1744 = vmatprep.subr.bf16.mxu0 0
        %1745 = vmatpush1.bf16.msra.mxu0 0
        %1746 = vmatprep.subr.bf16.mxu0 0
        %1747 = vmatpush1.bf16.msra.mxu0 0
        %1748 = vmatprep.subr.bf16.mxu0 0
        %1749 = vmatpush1.bf16.msra.mxu0 0
        %1750 = vmatprep.subr.bf16.mxu0 0
        %1751 = vmatpush1.bf16.msra.mxu0 0
        %1752 = vmatprep.subr.bf16.mxu0 0
        %1753 = vmatpush1.bf16.msra.mxu0 0
        %1754 = vmatprep.subr.bf16.mxu0 0
        %1755 = vmatpush1.bf16.msra.mxu0 0
        %1756 = vmatprep.subr.bf16.mxu0 0
        %1757 = vmatpush1.bf16.msra.mxu0 0
        %1758 = vmatprep.subr.bf16.mxu0 0
        %1759 = vmatpush1.bf16.msra.mxu0 0
        %1760 = vmatprep.subr.bf16.mxu0 0
        %1761 = vmatpush1.bf16.msra.mxu0 0
        %1762 = vmatprep.subr.bf16.mxu0 0
        %1763 = vmatpush1.bf16.msra.mxu0 0
        %1764 = vmatprep.subr.bf16.mxu0 0
        %1765 = vmatpush1.bf16.msra.mxu0 0
        %1766 = vmatprep.subr.bf16.mxu0 0
        %1767 = vmatpush1.bf16.msra.mxu0 0
        %1768 = vmatprep.subr.bf16.mxu0 0
        %1769 = vmatpush1.bf16.msra.mxu0 0
        %1770 = vmatprep.mubr.bf16.mxu0 0
        %1771 = vmatmul.mubr.bf16.gmra.mrb[0].mxu0 %v673
        %v1772 = vpop.f32.mrb[0].mxu0
        %v1773 = vadd.f32 %v1724, %v1772
        %v1774 = vpop.f32.mrb[0].mxu0
        %v1775 = vpop.f32.mrb[0].mxu0
        %v1776 = vpop.f32.mrb[0].mxu0
        %1777 = vdwg.mxu0
        %s1778 = scalar_lea.vmem [#allocation10], 48
        %v1779 = vld [vmem:[%s1778] sm:$0xf]
        %v1780 = vld [vmem:[%s1778 + $0x4] sm:$0xf]
        %v1781 = vld [vmem:[%s1778 + $0x8] sm:$0xf]
        %v1782 = vld [vmem:[%s1778 + $0xc] sm:$0xf]
        %s1783 = scalar_lea.vmem [#allocation14], 3
        %v1784 = vld [vmem:[%s1783] sm:$0x1]
        %v1786 = vlaneseq
        %v1787 = vshrl.u32 %v1786, 7
        %v1788 = vsub.s32 0, %v1787
        %v1789 = vrot.slane %v1784, %v1788
        %v1795 = vunpack.c.l.b16 %v1779
        %v1796 = vunpack.c.l.b16 %v1780
        %v1797 = vunpack.c.l.b16 %v1781
        %v1798 = vunpack.c.l.b16 %v1782
        %v1799 = vpack.c.b16 %v1796, %v1795
        %v1800 = vpack.c.b16 %v1798, %v1797
        %1803 = vmatprep.subr.bf16.mxu0 0
        %1804 = vmatpush1.bf16.msra.mxu0 %v1799
        %1805 = vmatprep.subr.bf16.mxu0 0
        %1806 = vmatpush1.bf16.msra.mxu0 %v1800
        %1807 = vmatprep.subr.bf16.mxu0 0
        %1808 = vmatpush1.bf16.msra.mxu0 0
        %1809 = vmatprep.subr.bf16.mxu0 0
        %1810 = vmatpush1.bf16.msra.mxu0 0
        %1811 = vmatprep.subr.bf16.mxu0 0
        %1812 = vmatpush1.bf16.msra.mxu0 0
        %1813 = vmatprep.subr.bf16.mxu0 0
        %1814 = vmatpush1.bf16.msra.mxu0 0
        %1815 = vmatprep.subr.bf16.mxu0 0
        %1816 = vmatpush1.bf16.msra.mxu0 0
        %1817 = vmatprep.subr.bf16.mxu0 0
        %1818 = vmatpush1.bf16.msra.mxu0 0
        %1819 = vmatprep.subr.bf16.mxu0 0
        %1820 = vmatpush1.bf16.msra.mxu0 0
        %1821 = vmatprep.subr.bf16.mxu0 0
        %1822 = vmatpush1.bf16.msra.mxu0 0
        %1823 = vmatprep.subr.bf16.mxu0 0
        %1824 = vmatpush1.bf16.msra.mxu0 0
        %1825 = vmatprep.subr.bf16.mxu0 0
        %1826 = vmatpush1.bf16.msra.mxu0 0
        %1827 = vmatprep.subr.bf16.mxu0 0
        %1828 = vmatpush1.bf16.msra.mxu0 0
        %1829 = vmatprep.subr.bf16.mxu0 0
        %1830 = vmatpush1.bf16.msra.mxu0 0
        %1831 = vmatprep.subr.bf16.mxu0 0
        %1832 = vmatpush1.bf16.msra.mxu0 0
        %1833 = vmatprep.subr.bf16.mxu0 0
        %1834 = vmatpush1.bf16.msra.mxu0 0
        %1835 = vmatprep.mubr.bf16.mxu0 0
        %1836 = vmatmul.mubr.bf16.gmra.mrb[0].mxu0 %v739
        %v1837 = vpop.f32.mrb[0].mxu0
        %v1838 = vadd.f32 %v1789, %v1837
        %v1839 = vpop.f32.mrb[0].mxu0
        %v1840 = vpop.f32.mrb[0].mxu0
        %v1841 = vpop.f32.mrb[0].mxu0
        %1842 = vdwg.mxu0
        %s1843 = scalar_lea.vmem [#allocation11], 48
        %v1844 = vld [vmem:[%s1843] sm:$0xf]
        %v1845 = vld [vmem:[%s1843 + $0x4] sm:$0xf]
        %v1846 = vld [vmem:[%s1843 + $0x8] sm:$0xf]
        %v1847 = vld [vmem:[%s1843 + $0xc] sm:$0xf]
        %s1848 = scalar_lea.vmem [#allocation16], 3
        %v1849 = vld [vmem:[%s1848] sm:$0x1]
        %v1851 = vlaneseq
        %v1852 = vshrl.u32 %v1851, 7
        %v1853 = vsub.s32 0, %v1852
        %v1854 = vrot.slane %v1849, %v1853
        %v1860 = vunpack.c.l.b16 %v1844
        %v1861 = vunpack.c.l.b16 %v1845
        %v1862 = vunpack.c.l.b16 %v1846
        %v1863 = vunpack.c.l.b16 %v1847
        %v1864 = vpack.c.b16 %v1861, %v1860
        %v1865 = vpack.c.b16 %v1863, %v1862
        %1868 = vmatprep.subr.bf16.mxu0 0
        %1869 = vmatpush1.bf16.msra.mxu0 %v1864
        %1870 = vmatprep.subr.bf16.mxu0 0
        %1871 = vmatpush1.bf16.msra.mxu0 %v1865
        %1872 = vmatprep.subr.bf16.mxu0 0
        %1873 = vmatpush1.bf16.msra.mxu0 0
        %1874 = vmatprep.subr.bf16.mxu0 0
        %1875 = vmatpush1.bf16.msra.mxu0 0
        %1876 = vmatprep.subr.bf16.mxu0 0
        %1877 = vmatpush1.bf16.msra.mxu0 0
        %1878 = vmatprep.subr.bf16.mxu0 0
        %1879 = vmatpush1.bf16.msra.mxu0 0
        %1880 = vmatprep.subr.bf16.mxu0 0
        %1881 = vmatpush1.bf16.msra.mxu0 0
        %1882 = vmatprep.subr.bf16.mxu0 0
        %1883 = vmatpush1.bf16.msra.mxu0 0
        %1884 = vmatprep.subr.bf16.mxu0 0
        %1885 = vmatpush1.bf16.msra.mxu0 0
        %1886 = vmatprep.subr.bf16.mxu0 0
        %1887 = vmatpush1.bf16.msra.mxu0 0
        %1888 = vmatprep.subr.bf16.mxu0 0
        %1889 = vmatpush1.bf16.msra.mxu0 0
        %1890 = vmatprep.subr.bf16.mxu0 0
        %1891 = vmatpush1.bf16.msra.mxu0 0
        %1892 = vmatprep.subr.bf16.mxu0 0
        %1893 = vmatpush1.bf16.msra.mxu0 0
        %1894 = vmatprep.subr.bf16.mxu0 0
        %1895 = vmatpush1.bf16.msra.mxu0 0
        %1896 = vmatprep.subr.bf16.mxu0 0
        %1897 = vmatpush1.bf16.msra.mxu0 0
        %1898 = vmatprep.subr.bf16.mxu0 0
        %1899 = vmatpush1.bf16.msra.mxu0 0
        %1900 = vmatprep.mubr.bf16.mxu0 0
        %1901 = vmatmul.mubr.bf16.gmra.mrb[0].mxu0 %v805
        %v1902 = vpop.f32.mrb[0].mxu0
        %v1903 = vadd.f32 %v1854, %v1902
        %v1904 = vpop.f32.mrb[0].mxu0
        %v1905 = vpop.f32.mrb[0].mxu0
        %v1906 = vpop.f32.mrb[0].mxu0
        %1907 = vdwg.mxu0
        %v1908 = vmul.f32 %v1773, 0.35355338
        %v1909 = vpack.c.bf16 %v1908, %v1908
        %v1910 = vpack.c.bf16 %v1838, %v1838
        %v1912 = vsel %vm850, %v1909, 0
        %v1915 = vsel %vm850, %v1910, 0
        %1917 = vmatprep.subr.bf16.mxu0 0
        %1918 = vmatpush1.bf16.xpose.msra.mxu0 %v1915
        %1919 = vmatprep.subr.bf16.mxu0 0
        %1920 = vmatpush1.bf16.xpose.msra.mxu0 0
        %1921 = vmatprep.subr.bf16.mxu0 0
        %1922 = vmatpush1.bf16.xpose.msra.mxu0 0
        %1923 = vmatprep.subr.bf16.mxu0 0
        %1924 = vmatpush1.bf16.xpose.msra.mxu0 0
        %1925 = vmatprep.subr.bf16.mxu0 0
        %1926 = vmatpush1.bf16.xpose.msra.mxu0 0
        %1927 = vmatprep.subr.bf16.mxu0 0
        %1928 = vmatpush1.bf16.xpose.msra.mxu0 0
        %1929 = vmatprep.subr.bf16.mxu0 0
        %1930 = vmatpush1.bf16.xpose.msra.mxu0 0
        %1931 = vmatprep.subr.bf16.mxu0 0
        %1932 = vmatpush1.bf16.xpose.msra.mxu0 0
        %1933 = vmatprep.subr.bf16.mxu0 0
        %1934 = vmatpush1.bf16.xpose.msra.mxu0 0
        %1935 = vmatprep.subr.bf16.mxu0 0
        %1936 = vmatpush1.bf16.xpose.msra.mxu0 0
        %1937 = vmatprep.subr.bf16.mxu0 0
        %1938 = vmatpush1.bf16.xpose.msra.mxu0 0
        %1939 = vmatprep.subr.bf16.mxu0 0
        %1940 = vmatpush1.bf16.xpose.msra.mxu0 0
        %1941 = vmatprep.subr.bf16.mxu0 0
        %1942 = vmatpush1.bf16.xpose.msra.mxu0 0
        %1943 = vmatprep.subr.bf16.mxu0 0
        %1944 = vmatpush1.bf16.xpose.msra.mxu0 0
        %1945 = vmatprep.subr.bf16.mxu0 0
        %1946 = vmatpush1.bf16.xpose.msra.mxu0 0
        %1947 = vmatprep.subr.bf16.mxu0 0
        %1948 = vmatpush1.bf16.xpose.msra.mxu0 0
        %1949 = vmatprep.mubr.bf16.mxu0 0
        %1950 = vmatmul.mubr.bf16.gmra.mrb[0].mxu0 %v1912
        %v1951 = vpop.f32.mrb[0].mxu0
        %v1952 = vadd.f32 0.0, %v1951
        %v1953 = vpop.f32.mrb[0].mxu0
        %v1954 = vpop.f32.mrb[0].mxu0
        %v1955 = vpop.f32.mrb[0].mxu0
        %1956 = vdwg.mxu0
        %v1957 = vsel %vm850, %v1952, -inf
        %1958 = vmax.xlane.f32.xlu0 %v1957
        %v1959 = vpop.xlane.xlu0 %1958
        %v1960 = vsub.f32 %v1952, %v1959
        %v1961 = vmul.f32 %v1960, 1.442695
        %v1962 = vpow.pop %v1961
        %v1963 = vsel %vm850, %v1962, 0.0
        %1964 = vadd.xlane.f32.xlu0 %v1963
        %v1965 = vpop.xlane.xlu0 %1964
        %v1966 = vrcp.pop %v1965
        %v1967 = vmul.f32 %v1962, %v1966
        %v1968 = vadd.f32 %v1614, %v1967
        %v1969 = vpack.c.bf16 %v1967, %v1967
        %v1970 = vpack.c.bf16 %v1903, %v1903
        %v1972 = vsel %vm850, %v1969, 0
        %v1975 = vsel %vm914, %v1970, 0
        %1977 = vmatprep.subr.bf16.mxu0 0
        %1978 = vmatpush1.bf16.msra.mxu0 %v1975
        %1979 = vmatprep.subr.bf16.mxu0 0
        %1980 = vmatpush1.bf16.msra.mxu0 0
        %1981 = vmatprep.subr.bf16.mxu0 0
        %1982 = vmatpush1.bf16.msra.mxu0 0
        %1983 = vmatprep.subr.bf16.mxu0 0
        %1984 = vmatpush1.bf16.msra.mxu0 0
        %1985 = vmatprep.subr.bf16.mxu0 0
        %1986 = vmatpush1.bf16.msra.mxu0 0
        %1987 = vmatprep.subr.bf16.mxu0 0
        %1988 = vmatpush1.bf16.msra.mxu0 0
        %1989 = vmatprep.subr.bf16.mxu0 0
        %1990 = vmatpush1.bf16.msra.mxu0 0
        %1991 = vmatprep.subr.bf16.mxu0 0
        %1992 = vmatpush1.bf16.msra.mxu0 0
        %1993 = vmatprep.subr.bf16.mxu0 0
        %1994 = vmatpush1.bf16.msra.mxu0 0
        %1995 = vmatprep.subr.bf16.mxu0 0
        %1996 = vmatpush1.bf16.msra.mxu0 0
        %1997 = vmatprep.subr.bf16.mxu0 0
        %1998 = vmatpush1.bf16.msra.mxu0 0
        %1999 = vmatprep.subr.bf16.mxu0 0
        %2000 = vmatpush1.bf16.msra.mxu0 0
        %2001 = vmatprep.subr.bf16.mxu0 0
        %2002 = vmatpush1.bf16.msra.mxu0 0
        %2003 = vmatprep.subr.bf16.mxu0 0
        %2004 = vmatpush1.bf16.msra.mxu0 0
        %2005 = vmatprep.subr.bf16.mxu0 0
        %2006 = vmatpush1.bf16.msra.mxu0 0
        %2007 = vmatprep.subr.bf16.mxu0 0
        %2008 = vmatpush1.bf16.msra.mxu0 0
        %2009 = vmatprep.mubr.bf16.mxu0 0
        %2010 = vmatmul.mubr.bf16.gmra.mrb[0].mxu0 %v1972
        %v2011 = vpop.f32.mrb[0].mxu0
        %v2012 = vadd.f32 0.0, %v2011
        %v2013 = vpop.f32.mrb[0].mxu0
        %v2014 = vpop.f32.mrb[0].mxu0
        %v2015 = vpop.f32.mrb[0].mxu0
        %2016 = vdwg.mxu0
        %v2017 = vpack.c.bf16 %v2012, %v2012
        %s2018 = scalar_lea.vmem [#allocation17], 12
        %v2019 = vld [vmem:[%s2018] sm:$0xf]
        %v2021 = vsel %vm850, %v2017, 0
        %v2024 = vsel %vm914, %v2019, 0
        %2026 = vmatprep.subr.bf16.mxu0 0
        %2027 = vmatpush1.bf16.msra.mxu0 %v2024
        %2028 = vmatprep.subr.bf16.mxu0 0
        %2029 = vmatpush1.bf16.msra.mxu0 0
        %2030 = vmatprep.subr.bf16.mxu0 0
        %2031 = vmatpush1.bf16.msra.mxu0 0
        %2032 = vmatprep.subr.bf16.mxu0 0
        %2033 = vmatpush1.bf16.msra.mxu0 0
        %2034 = vmatprep.subr.bf16.mxu0 0
        %2035 = vmatpush1.bf16.msra.mxu0 0
        %2036 = vmatprep.subr.bf16.mxu0 0
        %2037 = vmatpush1.bf16.msra.mxu0 0
        %2038 = vmatprep.subr.bf16.mxu0 0
        %2039 = vmatpush1.bf16.msra.mxu0 0
        %2040 = vmatprep.subr.bf16.mxu0 0
        %2041 = vmatpush1.bf16.msra.mxu0 0
        %2042 = vmatprep.subr.bf16.mxu0 0
        %2043 = vmatpush1.bf16.msra.mxu0 0
        %2044 = vmatprep.subr.bf16.mxu0 0
        %2045 = vmatpush1.bf16.msra.mxu0 0
        %2046 = vmatprep.subr.bf16.mxu0 0
        %2047 = vmatpush1.bf16.msra.mxu0 0
        %2048 = vmatprep.subr.bf16.mxu0 0
        %2049 = vmatpush1.bf16.msra.mxu0 0
        %2050 = vmatprep.subr.bf16.mxu0 0
        %2051 = vmatpush1.bf16.msra.mxu0 0
        %2052 = vmatprep.subr.bf16.mxu0 0
        %2053 = vmatpush1.bf16.msra.mxu0 0
        %2054 = vmatprep.subr.bf16.mxu0 0
        %2055 = vmatpush1.bf16.msra.mxu0 0
        %2056 = vmatprep.subr.bf16.mxu0 0
        %2057 = vmatpush1.bf16.msra.mxu0 0
        %2058 = vmatprep.mubr.bf16.mxu0 0
        %2059 = vmatmul.mubr.bf16.gmra.mrb[0].mxu0 %v2021
        %v2060 = vpop.f32.mrb[0].mxu0
        %v2061 = vadd.f32 0.0, %v2060
        %v2062 = vpop.f32.mrb[0].mxu0
        %v2063 = vpop.f32.mrb[0].mxu0
        %v2064 = vpop.f32.mrb[0].mxu0
        %2065 = vdwg.mxu0
        %v2066 = vadd.f32 %v1712, %v2061
        %v2067 = vld [vmem:[#allocation19] sm:$0x1]
        %v2069 = vlaneseq
        %v2070 = vshrl.u32 %v2069, 7
        %v2071 = vsub.s32 0, %v2070
        %v2072 = vrot.slane %v2067, %v2071
        %v2074 = vadd.f32 %v2066, %v2072
        %2075 = vst.msk [vmem:[%s636] sm:$0xff] %vm671, %v2074
        %v2076 = vmul.f32 %v1968, 0.25
        %2077 = vst.msk [vmem:[%s643] sm:$0xff] %vm850, %v2076
        %s2078 = sand.u32 %s310, 1
        %s2079 = scalar_lea.sflag [#allocation4], %s2078
        %s2080 = sand.u32 %s310, 1
        %s2081 = smul.addr %s2080, 8
        %s2082 = scalar_lea.vmem [#allocation20], %s2081
        %s2083 = sand.u32 %s338, 1
        %s2084 = scalar_lea.sflag [#allocation22], %s2083
        %s2085 = sand.u32 %s338, 1
        %s2086 = smul.addr %s2085, 8
        %s2087 = scalar_lea.vmem [#allocation21], %s2086
        // Predicated region
        $region109: #{tpu_custom_call.1} parent=63 // pred_check
          %p2088 = pneg %p320
        $region110: #{tpu_custom_call.1} parent=63 // pred_check_branch
          %2090 = sbr.rel (%p2088) target = $region112
        $region111: #{tpu_custom_call.1} parent=63 // pred_region
          %s2092 = ssub.s32 128, 128
          %2093 = vsyncadd %s2079, %s2092
          %s2094 = sadd.s32 %s45, %s44
          %s2095 = smul.addr %s2094, 128
          %s2096 = scalar_lea.hbm %s11, %s2095
          %s2098 = sshll.u32 %s2082, 4
          %s2099 = int_to_ptr.vmem [resolvable:$true] %s2098
          %2101 = dma.vmem_to_hbm [thread:$0]  %s2099, 128, %s2096, %s2079
        $region112: #{tpu_custom_call.1} parent=63 // pred_fallthru
          _
        // Predicated region
        $region113: #{tpu_custom_call.1} parent=63 // pred_check
          %p2102 = pneg %p348
        $region114: #{tpu_custom_call.1} parent=63 // pred_check_branch
          %2104 = sbr.rel (%p2102) target = $region116
        $region115: #{tpu_custom_call.1} parent=63 // pred_region
          %s2106 = ssub.s32 128, 128
          %2107 = vsyncadd %s2084, %s2106
          %s2108 = sadd.s32 %s45, %s44
          %s2109 = smul.addr %s2108, 128
          %s2110 = scalar_lea.hbm %s12, %s2109
          %s2112 = sshll.u32 %s2087, 4
          %s2113 = int_to_ptr.vmem [resolvable:$true] %s2112
          %2115 = dma.vmem_to_hbm [thread:$0]  %s2113, 128, %s2110, %s2084
        $region116: #{tpu_custom_call.1} parent=63 // pred_fallthru
          _
      $region64: #{tpu_custom_call.1} parent=5 // pred_fallthru
        _
      %p2116 = scmp.le.s32.totalorder 2, %s35
      // Predicated region
      $region117: #{tpu_custom_call.1} parent=5 // pred_check
        %p2117 = pneg %p2116
      $region118: #{tpu_custom_call.1} parent=5 // pred_check_branch
        %2119 = sbr.rel (%p2117) target = $region120
      $region119: #{tpu_custom_call.1} parent=5 // pred_region
        %s2120 = ssub.s32 %s35, 2
        // Predicated region
        $region121: #{tpu_custom_call.1} parent=119 // pred_check
          %p2121 = pneg %p326
        $region122: #{tpu_custom_call.1} parent=119 // pred_check_branch
          %2123 = sbr.rel (%p2121) target = $region124
        $region123: #{tpu_custom_call.1} parent=119 // pred_region
          %s2124 = sand.u32 %s311, 1
          %s2125 = scalar_lea.sflag [#allocation4], %s2124
          %s2126 = sand.u32 %s311, 1
          %s2127 = smul.addr %s2126, 8
          %s2128 = scalar_lea.vmem [#allocation20], %s2127
          %2129 = dma.done %s2125, 128
        $region124: #{tpu_custom_call.1} parent=119 // pred_fallthru
          _
        // Predicated region
        $region125: #{tpu_custom_call.1} parent=119 // pred_check
          %p2130 = pneg %p354
        $region126: #{tpu_custom_call.1} parent=119 // pred_check_branch
          %2132 = sbr.rel (%p2130) target = $region128
        $region127: #{tpu_custom_call.1} parent=119 // pred_region
          %s2133 = sand.u32 %s339, 1
          %s2134 = scalar_lea.sflag [#allocation22], %s2133
          %s2135 = sand.u32 %s339, 1
          %s2136 = smul.addr %s2135, 8
          %s2137 = scalar_lea.vmem [#allocation21], %s2136
          %2138 = dma.done %s2134, 128
        $region128: #{tpu_custom_call.1} parent=119 // pred_fallthru
          _
      $region120: #{tpu_custom_call.1} parent=5 // pred_fallthru
        _
    $region6: #{tpu_custom_call.1} parent=1 // loop_footer
      %s39 = sadd.s32 1, %s35
    $region7: #{tpu_custom_call.1} parent=1 // loop_footer_branch
      %34 = sbr.rel target = $region3
    $region8: #{tpu_custom_call.1} parent=1 // loop_exit
      _
    %2139 = vsyncpa [#allocation3], 1
    %s2140 = scalar_lea.sflag [#allocation3], 1
    %2141 = vsyncpa %s2140, 1
    %2142 = vsyncpa [#allocation6], 1
    %s2143 = scalar_lea.sflag [#allocation6], 1
    %2144 = vsyncpa %s2143, 1
    %2145 = vsyncpa [#allocation9], 1
    %2146 = vsyncpa [#allocation12], 1
    %2147 = vsyncpa [#allocation15], 1
    %2148 = vsyncpa [#allocation18], 1
    %2149 = vsyncpa [#allocation4], 1
    %s2150 = scalar_lea.sflag [#allocation4], 1
    %2151 = vsyncpa %s2150, 1
    %2152 = vsyncpa [#allocation22], 1
    %s2153 = scalar_lea.sflag [#allocation22], 1
    %2154 = vsyncpa %s2153, 1

</llo_original>
